<compile_context>
chip_gen: v6e
topology: v6e:2x2x1
jax: 0.10.0
libtpu: 0.0.40
codegen_flags: <defaults>
</compile_context>

<pallas_src>
import functools

import jax
import jax.numpy as jnp
from jax.experimental import pallas as pl
from jax.experimental.pallas import tpu as pltpu

MIN_NORM = 1e-15
PROJ_EPS = 4e-3

VMEM_SPEC = pl.BlockSpec(memory_space=pltpu.MemorySpace.VMEM)
SMEM_SPEC = pl.BlockSpec(memory_space=pltpu.MemorySpace.SMEM)


# ----------------------------- in-kernel math helpers -----------------------------
def _artanh(x):
    x = jnp.clip(x, -1.0 + 1e-7, 1.0 - 1e-7)
    return 0.5 * (jnp.log1p(x) - jnp.log1p(-x))


def _row_norm(x):
    return jnp.maximum(jnp.sqrt(jnp.sum(x * x, axis=-1, keepdims=True)), MIN_NORM)


def _logmap0(x, c):
    sqrt_c = c ** 0.5
    xn = _row_norm(x)
    return _artanh(sqrt_c * xn) * x / (sqrt_c * xn)


def _expmap0(u, c):
    sqrt_c = c ** 0.5
    un = _row_norm(u)
    return jnp.tanh(sqrt_c * un) * u / (sqrt_c * un)


def _proj(x, c):
    sqrt_c = c ** 0.5
    xn = _row_norm(x)
    maxnorm = (1.0 - PROJ_EPS) / sqrt_c
    return jnp.where(xn > maxnorm, x / xn * maxnorm, x)


# ----------------------------- the fused forward kernel -----------------------------
def base_forward_kernel(x_ref, adj_ref,
                        w1_ref, b1_ref, w2_ref, b2_ref,
                        wh1_ref, bh1_ref, wh2_ref, bh2_ref,
                        xmix1_ref, xmix2_ref, loss_ref,
                        *, c, tau, elastic):
    x = x_ref[...]
    adj = adj_ref[...]

    # ------------------ Euclidean GCN branch ------------------
    # conv1 + relu  (dropout p=0.5 in eval mode -> identity)
    h1 = jnp.dot(x, w1_ref[...], preferred_element_type=jnp.float32)
    x1 = jnp.dot(adj, h1, preferred_element_type=jnp.float32) + b1_ref[...]
    x_out_1 = jnp.maximum(x1, 0.0)
    # conv2 + fused log_softmax epilogue
    h2 = jnp.dot(x_out_1, w2_ref[...], preferred_element_type=jnp.float32)
    x2 = jnp.dot(adj, h2, preferred_element_type=jnp.float32) + b2_ref[...]
    m = jnp.max(x2, axis=1, keepdims=True)
    z = x2 - m
    x_out_2 = z - jnp.log(jnp.sum(jnp.exp(z), axis=1, keepdims=True))

    # ------------------ Hyperbolic GCN branch ------------------
    # D^-1 normalization folded in: inv_deg * (adj @ h) == (D^-1 A) @ h
    row_sum = jnp.sum(adj, axis=1, keepdims=True)
    inv_deg = jnp.where(row_sum > 0.0, 1.0 / jnp.maximum(row_sum, MIN_NORM), 0.0)

    # x_hyp = proj(expmap0(proj_tan0(x)))  (proj_tan0 is identity on the ball)
    x_hyp = _proj(_expmap0(x, c), c)

    def hgc_layer(x_h, w, b):
        # tangent-space graph conv: proj(expmap0(relu(D^-1 A (logmap0(x) W) + b)))
        u = _logmap0(x_h, c)
        h = jnp.dot(u, w, preferred_element_type=jnp.float32)
        h = inv_deg * jnp.dot(adj, h, preferred_element_type=jnp.float32) + b
        h = jnp.maximum(h, 0.0)
        return _proj(_expmap0(h, c), c)

    x_hyp1 = hgc_layer(x_hyp, wh1_ref[...], bh1_ref[...])
    x_hyp2 = hgc_layer(x_hyp1, wh2_ref[...], bh2_ref[...])

    # ------------------ fusion + contrastive losses ------------------
    def hyper_eucl_mix(xe, xh):
        log_h = _logmap0(xh, c)
        dist = jnp.sum((log_h - xe) ** 2, axis=-1, keepdims=True)
        h_sig = jax.nn.sigmoid(dist * log_h)              # F.dropout(p=0) identity
        dot = xe * h_sig
        x_mix = xe + elastic * jnp.maximum(dot * jax.nn.sigmoid(dot), 0.0)
        return x_mix, h_sig

    def compare_loss(e, h):
        en = e / jnp.maximum(_row_norm(e), 1e-12)          # F.normalize(dim=1)
        hn = h / jnp.maximum(_row_norm(h), 1e-12)

        def sim_exp(a, b):
            # a @ b.T  (single fused call; for large N pre-transpose / stream in
            # column blocks instead of holding three NxN matrices at once)
            s = jax.lax.dot_general(a, b, (((1,), (1,)), ((), ())),
                                    preferred_element_type=jnp.float32)
            return jnp.exp(s / tau)

        between = sim_exp(en, hn)
        esim = sim_exp(en, en)
        hsim = sim_exp(hn, hn)

        def psum(s):
            return jnp.sum(jnp.where(s > 0.5, s, 0.0), axis=1, keepdims=True)

        def nsum(s):
            return jnp.sum(jnp.where(s < 0.5, s, 0.0), axis=1, keepdims=True)

        num = psum(between) + psum(esim) + psum(hsim)
        den = num + nsum(between) + nsum(esim) + nsum(hsim)
        return jnp.mean(-jnp.log(num / den))

    x_mix_1, xh_sig_1 = hyper_eucl_mix(x_out_1, x_hyp1)
    x_mix_2, xh_sig_2 = hyper_eucl_mix(x_out_2, x_hyp2)
    loss = compare_loss(x_mix_1, xh_sig_1) + compare_loss(x_mix_2, xh_sig_2)

    xmix1_ref[...] = x_mix_1
    xmix2_ref[...] = x_mix_2
    loss_ref[0] = loss                                     # scalar -> SMEM output


# ----------------------------- wrapper -----------------------------
def base_module_forward(x, adj, params, *, c, tau, elastic):
    n, f = x.shape
    h = params["w1"].shape[1]
    d = params["w2"].shape[1]

    # advisory cost estimate for the XLA scheduler
    flops = 4 * n * h * (f + d) + 10 * n * n * (h + d)
    transcendentals = n * d + 6 * n * n + 8 * n * (h + d)
    bytes_accessed = 4 * (n * n + n * f + 2 * (f * h + h * d) + 2 * (h + d)
                          + n * h + n * d + 1)

    kernel = functools.partial(base_forward_kernel, c=c, tau=tau, elastic=elastic)
    x_mix_1, x_mix_2, loss = pl.pallas_call(
        kernel,
        out_shape=(
            jax.ShapeDtypeStruct((n, h), jnp.float32),
            jax.ShapeDtypeStruct((n, d), jnp.float32),
            jax.ShapeDtypeStruct((1,), jnp.float32),
        ),
        in_specs=[VMEM_SPEC] * 10,
        out_specs=(VMEM_SPEC, VMEM_SPEC, SMEM_SPEC),
        compiler_params=pltpu.CompilerParams(
            vmem_limit_bytes=64 * 1024 * 1024),            # safe on v5e/v6e/v7x
        cost_estimate=pl.CostEstimate(
            flops=int(flops),
            transcendentals=int(transcendentals),
            bytes_accessed=int(bytes_accessed)),
    )(x, adj,
      params["w1"], params["b1"], params["w2"], params["b2"],
      params["wh1"], params["bh1"], params["wh2"], params["bh2"])
    return x_mix_1, x_mix_2, loss[0]


# ----------------------------- params -----------------------------
def init_params(key, num_feature, hidden_size, dim):
    ks = jax.random.split(key, 4)

    def glorot(k, shape):
        scale = (2.0 / (shape[0] + shape[1])) ** 0.5
        return scale * jax.random.normal(k, shape, jnp.float32)

    return {
        "w1": glorot(ks[0], (num_feature, hidden_size)),
        "b1": jnp.zeros((1, hidden_size), jnp.float32),
        "w2": glorot(ks[1], (hidden_size, dim)),
        "b2": jnp.zeros((1, dim), jnp.float32),
        "wh1": glorot(ks[2], (num_feature, hidden_size)),
        "bh1": jnp.zeros((1, hidden_size), jnp.float32),
        "wh2": glorot(ks[3], (hidden_size, dim)),
        "bh2": jnp.zeros((1, dim), jnp.float32),
    }


# ----------------------------- main -----------------------------
if __name__ == "__main__":
    N, NUM_FEATURE, HIDDEN, DIM = 16, 32, 32, 16
    C, TAU, ELASTIC = 1.0, 0.5, 0.5   # deterministic stand-in for np.random.random()

    key = jax.random.PRNGKey(0)
    kx, ka, kp = jax.random.split(key, 3)

    x = jax.random.normal(kx, (N, NUM_FEATURE), jnp.float32)
    a = (jax.random.uniform(ka, (N, N)) < 0.3).astype(jnp.float32)
    adj = jnp.clip(a + a.T + jnp.eye(N, dtype=jnp.float32), 0.0, 1.0)

    params = init_params(kp, NUM_FEATURE, HIDDEN, DIM)

    x_mix_1, x_mix_2, comp_loss = base_module_forward(
        x, adj, params, c=C, tau=TAU, elastic=ELASTIC)
    jax.block_until_ready((x_mix_1, x_mix_2, comp_loss))

    assert x_mix_1.shape == (N, HIDDEN)
    assert x_mix_2.shape == (N, DIM)
    assert bool(jnp.isfinite(comp_loss))
    assert bool(jnp.all(jnp.isfinite(x_mix_1)))
    assert bool(jnp.all(jnp.isfinite(x_mix_2)))

    print("KERNEL_OK")
</pallas_src>

<mosaic_0001>
module attributes {stable_mosaic.version = 11 : i64} {
  func.func @base_forward_kernel(%arg0: memref<16x32xf32, #tpu.memory_space<vmem>>, %arg1: memref<16x16xf32, #tpu.memory_space<vmem>>, %arg2: memref<32x32xf32, #tpu.memory_space<vmem>>, %arg3: memref<1x32xf32, #tpu.memory_space<vmem>>, %arg4: memref<32x16xf32, #tpu.memory_space<vmem>>, %arg5: memref<1x16xf32, #tpu.memory_space<vmem>>, %arg6: memref<32x32xf32, #tpu.memory_space<vmem>>, %arg7: memref<1x32xf32, #tpu.memory_space<vmem>>, %arg8: memref<32x16xf32, #tpu.memory_space<vmem>>, %arg9: memref<1x16xf32, #tpu.memory_space<vmem>>, %arg10: memref<16x32xf32, #tpu.memory_space<vmem>>, %arg11: memref<16x16xf32, #tpu.memory_space<vmem>>, %arg12: memref<1xf32, #tpu.memory_space<smem>>) attributes {dimension_semantics = [], scalar_prefetch = 0 : i64, scratch_operands = 0 : i64, tpu.core_type = #tpu.core_type<tc>} {
    %c0 = arith.constant 0 : index
    %c0_0 = arith.constant 0 : index
    %0 = vector.load %arg0[%c0, %c0_0] : memref<16x32xf32, #tpu.memory_space<vmem>>, vector<16x32xf32>
    %c0_1 = arith.constant 0 : index
    %c0_2 = arith.constant 0 : index
    %1 = vector.load %arg1[%c0_1, %c0_2] : memref<16x16xf32, #tpu.memory_space<vmem>>, vector<16x16xf32>
    %c0_3 = arith.constant 0 : index
    %c0_4 = arith.constant 0 : index
    %2 = vector.load %arg2[%c0_3, %c0_4] : memref<32x32xf32, #tpu.memory_space<vmem>>, vector<32x32xf32>
    %cst = arith.constant dense<0.000000e+00> : vector<16x32xf32>
    %3 = tpu.matmul %0, %2, %cst {dimension_numbers = #tpu.dot_dimension_numbers<[1], [0], [0], [1], [0, 0, 1, 1], [], []>} : vector<16x32xf32>, vector<32x32xf32>, vector<16x32xf32> -> vector<16x32xf32>
    %cst_5 = arith.constant dense<0.000000e+00> : vector<16x32xf32>
    %4 = tpu.matmul %1, %3, %cst_5 {dimension_numbers = #tpu.dot_dimension_numbers<[1], [0], [0], [1], [0, 0, 1, 1], [], []>} : vector<16x16xf32>, vector<16x32xf32>, vector<16x32xf32> -> vector<16x32xf32>
    %c0_6 = arith.constant 0 : index
    %c0_7 = arith.constant 0 : index
    %5 = vector.load %arg3[%c0_6, %c0_7] : memref<1x32xf32, #tpu.memory_space<vmem>>, vector<1x32xf32>
    %6 = vector.broadcast %5 : vector<1x32xf32> to vector<16x32xf32>
    %7 = arith.addf %4, %6 : vector<16x32xf32>
    %cst_8 = arith.constant 0.000000e+00 : f32
    %8 = vector.broadcast %cst_8 : f32 to vector<16x32xf32>
    %9 = arith.maximumf %7, %8 : vector<16x32xf32>
    %c0_9 = arith.constant 0 : index
    %c0_10 = arith.constant 0 : index
    %10 = vector.load %arg4[%c0_9, %c0_10] : memref<32x16xf32, #tpu.memory_space<vmem>>, vector<32x16xf32>
    %cst_11 = arith.constant dense<0.000000e+00> : vector<16x16xf32>
    %11 = tpu.matmul %9, %10, %cst_11 {dimension_numbers = #tpu.dot_dimension_numbers<[1], [0], [0], [1], [0, 0, 1, 1], [], []>} : vector<16x32xf32>, vector<32x16xf32>, vector<16x16xf32> -> vector<16x16xf32>
    %cst_12 = arith.constant dense<0.000000e+00> : vector<16x16xf32>
    %12 = tpu.matmul %1, %11, %cst_12 {dimension_numbers = #tpu.dot_dimension_numbers<[1], [0], [0], [1], [0, 0, 1, 1], [], []>} : vector<16x16xf32>, vector<16x16xf32>, vector<16x16xf32> -> vector<16x16xf32>
    %c0_13 = arith.constant 0 : index
    %c0_14 = arith.constant 0 : index
    %13 = vector.load %arg5[%c0_13, %c0_14] : memref<1x16xf32, #tpu.memory_space<vmem>>, vector<1x16xf32>
    %14 = vector.broadcast %13 : vector<1x16xf32> to vector<16x16xf32>
    %15 = arith.addf %12, %14 : vector<16x16xf32>
    %cst_15 = arith.constant dense<0xFF800000> : vector<16xf32>
    %16 = vector.multi_reduction <maximumf>, %15, %cst_15 [1] : vector<16x16xf32> to vector<16xf32>
    %17 = vector.shape_cast %16 : vector<16xf32> to vector<16x1xf32>
    %18 = vector.broadcast %17 : vector<16x1xf32> to vector<16x16xf32>
    %19 = arith.subf %15, %18 : vector<16x16xf32>
    %20 = math.exp %19 : vector<16x16xf32>
    %cst_16 = arith.constant dense<0.000000e+00> : vector<16xf32>
    %21 = vector.multi_reduction <add>, %20, %cst_16 [1] : vector<16x16xf32> to vector<16xf32>
    %22 = vector.shape_cast %21 : vector<16xf32> to vector<16x1xf32>
    %23 = math.log %22 : vector<16x1xf32>
    %24 = vector.broadcast %23 : vector<16x1xf32> to vector<16x16xf32>
    %25 = arith.subf %19, %24 : vector<16x16xf32>
    %cst_17 = arith.constant dense<0.000000e+00> : vector<16xf32>
    %26 = vector.multi_reduction <add>, %1, %cst_17 [1] : vector<16x16xf32> to vector<16xf32>
    %27 = vector.shape_cast %26 : vector<16xf32> to vector<16x1xf32>
    %cst_18 = arith.constant 0.000000e+00 : f32
    %28 = vector.broadcast %cst_18 : f32 to vector<16x1xf32>
    %29 = arith.cmpf ogt, %27, %28 : vector<16x1xf32>
    %cst_19 = arith.constant 1.000000e-15 : f32
    %30 = vector.broadcast %cst_19 : f32 to vector<16x1xf32>
    %31 = arith.maximumf %27, %30 : vector<16x1xf32>
    %cst_20 = arith.constant 1.000000e+00 : f32
    %32 = vector.broadcast %cst_20 : f32 to vector<16x1xf32>
    %33 = arith.divf %32, %31 : vector<16x1xf32>
    %cst_21 = arith.constant 0.000000e+00 : f32
    %34 = vector.broadcast %cst_21 : f32 to vector<16x1xf32>
    %35 = arith.select %29, %33, %34 : vector<16x1xi1>, vector<16x1xf32>
    %36 = arith.mulf %0, %0 : vector<16x32xf32>
    %cst_22 = arith.constant dense<0.000000e+00> : vector<16xf32>
    %37 = vector.multi_reduction <add>, %36, %cst_22 [1] : vector<16x32xf32> to vector<16xf32>
    %38 = vector.shape_cast %37 : vector<16xf32> to vector<16x1xf32>
    %39 = math.sqrt %38 : vector<16x1xf32>
    %cst_23 = arith.constant 1.000000e-15 : f32
    %40 = vector.broadcast %cst_23 : f32 to vector<16x1xf32>
    %41 = arith.maximumf %39, %40 : vector<16x1xf32>
    %cst_24 = arith.constant 1.000000e+00 : f32
    %42 = vector.broadcast %cst_24 : f32 to vector<16x1xf32>
    %43 = arith.mulf %42, %41 : vector<16x1xf32>
    %44 = math.tanh %43 : vector<16x1xf32>
    %45 = vector.broadcast %44 : vector<16x1xf32> to vector<16x32xf32>
    %46 = arith.mulf %45, %0 : vector<16x32xf32>
    %cst_25 = arith.constant 1.000000e+00 : f32
    %47 = vector.broadcast %cst_25 : f32 to vector<16x1xf32>
    %48 = arith.mulf %47, %41 : vector<16x1xf32>
    %49 = vector.broadcast %48 : vector<16x1xf32> to vector<16x32xf32>
    %50 = arith.divf %46, %49 : vector<16x32xf32>
    %51 = arith.mulf %50, %50 : vector<16x32xf32>
    %cst_26 = arith.constant dense<0.000000e+00> : vector<16xf32>
    %52 = vector.multi_reduction <add>, %51, %cst_26 [1] : vector<16x32xf32> to vector<16xf32>
    %53 = vector.shape_cast %52 : vector<16xf32> to vector<16x1xf32>
    %54 = math.sqrt %53 : vector<16x1xf32>
    %cst_27 = arith.constant 1.000000e-15 : f32
    %55 = vector.broadcast %cst_27 : f32 to vector<16x1xf32>
    %56 = arith.maximumf %54, %55 : vector<16x1xf32>
    %cst_28 = arith.constant 0.995999991 : f32
    %57 = vector.broadcast %cst_28 : f32 to vector<16x1xf32>
    %58 = arith.cmpf ogt, %56, %57 : vector<16x1xf32>
    %59 = vector.broadcast %56 : vector<16x1xf32> to vector<16x32xf32>
    %60 = arith.divf %50, %59 : vector<16x32xf32>
    %cst_29 = arith.constant 0.995999991 : f32
    %61 = vector.broadcast %cst_29 : f32 to vector<16x32xf32>
    %62 = arith.mulf %60, %61 : vector<16x32xf32>
    %63 = vector.shape_cast %58 : vector<16x1xi1> to vector<16x1xi1>
    %64 = vector.broadcast %63 : vector<16x1xi1> to vector<16x32xi1>
    %65 = arith.select %64, %62, %50 : vector<16x32xi1>, vector<16x32xf32>
    %c0_30 = arith.constant 0 : index
    %c0_31 = arith.constant 0 : index
    %66 = vector.load %arg6[%c0_30, %c0_31] : memref<32x32xf32, #tpu.memory_space<vmem>>, vector<32x32xf32>
    %c0_32 = arith.constant 0 : index
    %c0_33 = arith.constant 0 : index
    %67 = vector.load %arg7[%c0_32, %c0_33] : memref<1x32xf32, #tpu.memory_space<vmem>>, vector<1x32xf32>
    %68 = arith.mulf %65, %65 : vector<16x32xf32>
    %cst_34 = arith.constant dense<0.000000e+00> : vector<16xf32>
    %69 = vector.multi_reduction <add>, %68, %cst_34 [1] : vector<16x32xf32> to vector<16xf32>
    %70 = vector.shape_cast %69 : vector<16xf32> to vector<16x1xf32>
    %71 = math.sqrt %70 : vector<16x1xf32>
    %cst_35 = arith.constant 1.000000e-15 : f32
    %72 = vector.broadcast %cst_35 : f32 to vector<16x1xf32>
    %73 = arith.maximumf %71, %72 : vector<16x1xf32>
    %cst_36 = arith.constant 1.000000e+00 : f32
    %74 = vector.broadcast %cst_36 : f32 to vector<16x1xf32>
    %75 = arith.mulf %74, %73 : vector<16x1xf32>
    %cst_37 = arith.constant -0.99999988 : f32
    %cst_38 = arith.constant 0.99999988 : f32
    %76 = vector.broadcast %cst_37 : f32 to vector<16x1xf32>
    %77 = arith.maximumf %76, %75 : vector<16x1xf32>
    %78 = vector.broadcast %cst_38 : f32 to vector<16x1xf32>
    %79 = arith.minimumf %78, %77 : vector<16x1xf32>
    %80 = math.log1p %79 : vector<16x1xf32>
    %cst_39 = arith.constant 0.000000e+00 : f32
    %81 = vector.broadcast %cst_39 : f32 to vector<16x1xf32>
    %82 = arith.subf %81, %79 : vector<16x1xf32>
    %83 = math.log1p %82 : vector<16x1xf32>
    %84 = arith.subf %80, %83 : vector<16x1xf32>
    %cst_40 = arith.constant 5.000000e-01 : f32
    %85 = vector.broadcast %cst_40 : f32 to vector<16x1xf32>
    %86 = arith.mulf %85, %84 : vector<16x1xf32>
    %87 = vector.broadcast %86 : vector<16x1xf32> to vector<16x32xf32>
    %88 = arith.mulf %87, %65 : vector<16x32xf32>
    %cst_41 = arith.constant 1.000000e+00 : f32
    %89 = vector.broadcast %cst_41 : f32 to vector<16x1xf32>
    %90 = arith.mulf %89, %73 : vector<16x1xf32>
    %91 = vector.broadcast %90 : vector<16x1xf32> to vector<16x32xf32>
    %92 = arith.divf %88, %91 : vector<16x32xf32>
    %cst_42 = arith.constant dense<0.000000e+00> : vector<16x32xf32>
    %93 = tpu.matmul %92, %66, %cst_42 {dimension_numbers = #tpu.dot_dimension_numbers<[1], [0], [0], [1], [0, 0, 1, 1], [], []>} : vector<16x32xf32>, vector<32x32xf32>, vector<16x32xf32> -> vector<16x32xf32>
    %cst_43 = arith.constant dense<0.000000e+00> : vector<16x32xf32>
    %94 = tpu.matmul %1, %93, %cst_43 {dimension_numbers = #tpu.dot_dimension_numbers<[1], [0], [0], [1], [0, 0, 1, 1], [], []>} : vector<16x16xf32>, vector<16x32xf32>, vector<16x32xf32> -> vector<16x32xf32>
    %95 = vector.broadcast %35 : vector<16x1xf32> to vector<16x32xf32>
    %96 = arith.mulf %95, %94 : vector<16x32xf32>
    %97 = vector.broadcast %67 : vector<1x32xf32> to vector<16x32xf32>
    %98 = arith.addf %96, %97 : vector<16x32xf32>
    %cst_44 = arith.constant 0.000000e+00 : f32
    %99 = vector.broadcast %cst_44 : f32 to vector<16x32xf32>
    %100 = arith.maximumf %98, %99 : vector<16x32xf32>
    %101 = arith.mulf %100, %100 : vector<16x32xf32>
    %cst_45 = arith.constant dense<0.000000e+00> : vector<16xf32>
    %102 = vector.multi_reduction <add>, %101, %cst_45 [1] : vector<16x32xf32> to vector<16xf32>
    %103 = vector.shape_cast %102 : vector<16xf32> to vector<16x1xf32>
    %104 = math.sqrt %103 : vector<16x1xf32>
    %cst_46 = arith.constant 1.000000e-15 : f32
    %105 = vector.broadcast %cst_46 : f32 to vector<16x1xf32>
    %106 = arith.maximumf %104, %105 : vector<16x1xf32>
    %cst_47 = arith.constant 1.000000e+00 : f32
    %107 = vector.broadcast %cst_47 : f32 to vector<16x1xf32>
    %108 = arith.mulf %107, %106 : vector<16x1xf32>
    %109 = math.tanh %108 : vector<16x1xf32>
    %110 = vector.broadcast %109 : vector<16x1xf32> to vector<16x32xf32>
    %111 = arith.mulf %110, %100 : vector<16x32xf32>
    %cst_48 = arith.constant 1.000000e+00 : f32
    %112 = vector.broadcast %cst_48 : f32 to vector<16x1xf32>
    %113 = arith.mulf %112, %106 : vector<16x1xf32>
    %114 = vector.broadcast %113 : vector<16x1xf32> to vector<16x32xf32>
    %115 = arith.divf %111, %114 : vector<16x32xf32>
    %116 = arith.mulf %115, %115 : vector<16x32xf32>
    %cst_49 = arith.constant dense<0.000000e+00> : vector<16xf32>
    %117 = vector.multi_reduction <add>, %116, %cst_49 [1] : vector<16x32xf32> to vector<16xf32>
    %118 = vector.shape_cast %117 : vector<16xf32> to vector<16x1xf32>
    %119 = math.sqrt %118 : vector<16x1xf32>
    %cst_50 = arith.constant 1.000000e-15 : f32
    %120 = vector.broadcast %cst_50 : f32 to vector<16x1xf32>
    %121 = arith.maximumf %119, %120 : vector<16x1xf32>
    %cst_51 = arith.constant 0.995999991 : f32
    %122 = vector.broadcast %cst_51 : f32 to vector<16x1xf32>
    %123 = arith.cmpf ogt, %121, %122 : vector<16x1xf32>
    %124 = vector.broadcast %121 : vector<16x1xf32> to vector<16x32xf32>
    %125 = arith.divf %115, %124 : vector<16x32xf32>
    %cst_52 = arith.constant 0.995999991 : f32
    %126 = vector.broadcast %cst_52 : f32 to vector<16x32xf32>
    %127 = arith.mulf %125, %126 : vector<16x32xf32>
    %128 = vector.shape_cast %123 : vector<16x1xi1> to vector<16x1xi1>
    %129 = vector.broadcast %128 : vector<16x1xi1> to vector<16x32xi1>
    %130 = arith.select %129, %127, %115 : vector<16x32xi1>, vector<16x32xf32>
    %c0_53 = arith.constant 0 : index
    %c0_54 = arith.constant 0 : index
    %131 = vector.load %arg8[%c0_53, %c0_54] : memref<32x16xf32, #tpu.memory_space<vmem>>, vector<32x16xf32>
    %c0_55 = arith.constant 0 : index
    %c0_56 = arith.constant 0 : index
    %132 = vector.load %arg9[%c0_55, %c0_56] : memref<1x16xf32, #tpu.memory_space<vmem>>, vector<1x16xf32>
    %133 = arith.mulf %130, %130 : vector<16x32xf32>
    %cst_57 = arith.constant dense<0.000000e+00> : vector<16xf32>
    %134 = vector.multi_reduction <add>, %133, %cst_57 [1] : vector<16x32xf32> to vector<16xf32>
    %135 = vector.shape_cast %134 : vector<16xf32> to vector<16x1xf32>
    %136 = math.sqrt %135 : vector<16x1xf32>
    %cst_58 = arith.constant 1.000000e-15 : f32
    %137 = vector.broadcast %cst_58 : f32 to vector<16x1xf32>
    %138 = arith.maximumf %136, %137 : vector<16x1xf32>
    %cst_59 = arith.constant 1.000000e+00 : f32
    %139 = vector.broadcast %cst_59 : f32 to vector<16x1xf32>
    %140 = arith.mulf %139, %138 : vector<16x1xf32>
    %cst_60 = arith.constant -0.99999988 : f32
    %cst_61 = arith.constant 0.99999988 : f32
    %141 = vector.broadcast %cst_60 : f32 to vector<16x1xf32>
    %142 = arith.maximumf %141, %140 : vector<16x1xf32>
    %143 = vector.broadcast %cst_61 : f32 to vector<16x1xf32>
    %144 = arith.minimumf %143, %142 : vector<16x1xf32>
    %145 = math.log1p %144 : vector<16x1xf32>
    %cst_62 = arith.constant 0.000000e+00 : f32
    %146 = vector.broadcast %cst_62 : f32 to vector<16x1xf32>
    %147 = arith.subf %146, %144 : vector<16x1xf32>
    %148 = math.log1p %147 : vector<16x1xf32>
    %149 = arith.subf %145, %148 : vector<16x1xf32>
    %cst_63 = arith.constant 5.000000e-01 : f32
    %150 = vector.broadcast %cst_63 : f32 to vector<16x1xf32>
    %151 = arith.mulf %150, %149 : vector<16x1xf32>
    %152 = vector.broadcast %151 : vector<16x1xf32> to vector<16x32xf32>
    %153 = arith.mulf %152, %130 : vector<16x32xf32>
    %cst_64 = arith.constant 1.000000e+00 : f32
    %154 = vector.broadcast %cst_64 : f32 to vector<16x1xf32>
    %155 = arith.mulf %154, %138 : vector<16x1xf32>
    %156 = vector.broadcast %155 : vector<16x1xf32> to vector<16x32xf32>
    %157 = arith.divf %153, %156 : vector<16x32xf32>
    %cst_65 = arith.constant dense<0.000000e+00> : vector<16x16xf32>
    %158 = tpu.matmul %157, %131, %cst_65 {dimension_numbers = #tpu.dot_dimension_numbers<[1], [0], [0], [1], [0, 0, 1, 1], [], []>} : vector<16x32xf32>, vector<32x16xf32>, vector<16x16xf32> -> vector<16x16xf32>
    %cst_66 = arith.constant dense<0.000000e+00> : vector<16x16xf32>
    %159 = tpu.matmul %1, %158, %cst_66 {dimension_numbers = #tpu.dot_dimension_numbers<[1], [0], [0], [1], [0, 0, 1, 1], [], []>} : vector<16x16xf32>, vector<16x16xf32>, vector<16x16xf32> -> vector<16x16xf32>
    %160 = vector.broadcast %35 : vector<16x1xf32> to vector<16x16xf32>
    %161 = arith.mulf %160, %159 : vector<16x16xf32>
    %162 = vector.broadcast %132 : vector<1x16xf32> to vector<16x16xf32>
    %163 = arith.addf %161, %162 : vector<16x16xf32>
    %cst_67 = arith.constant 0.000000e+00 : f32
    %164 = vector.broadcast %cst_67 : f32 to vector<16x16xf32>
    %165 = arith.maximumf %163, %164 : vector<16x16xf32>
    %166 = arith.mulf %165, %165 : vector<16x16xf32>
    %cst_68 = arith.constant dense<0.000000e+00> : vector<16xf32>
    %167 = vector.multi_reduction <add>, %166, %cst_68 [1] : vector<16x16xf32> to vector<16xf32>
    %168 = vector.shape_cast %167 : vector<16xf32> to vector<16x1xf32>
    %169 = math.sqrt %168 : vector<16x1xf32>
    %cst_69 = arith.constant 1.000000e-15 : f32
    %170 = vector.broadcast %cst_69 : f32 to vector<16x1xf32>
    %171 = arith.maximumf %169, %170 : vector<16x1xf32>
    %cst_70 = arith.constant 1.000000e+00 : f32
    %172 = vector.broadcast %cst_70 : f32 to vector<16x1xf32>
    %173 = arith.mulf %172, %171 : vector<16x1xf32>
    %174 = math.tanh %173 : vector<16x1xf32>
    %175 = vector.broadcast %174 : vector<16x1xf32> to vector<16x16xf32>
    %176 = arith.mulf %175, %165 : vector<16x16xf32>
    %cst_71 = arith.constant 1.000000e+00 : f32
    %177 = vector.broadcast %cst_71 : f32 to vector<16x1xf32>
    %178 = arith.mulf %177, %171 : vector<16x1xf32>
    %179 = vector.broadcast %178 : vector<16x1xf32> to vector<16x16xf32>
    %180 = arith.divf %176, %179 : vector<16x16xf32>
    %181 = arith.mulf %180, %180 : vector<16x16xf32>
    %cst_72 = arith.constant dense<0.000000e+00> : vector<16xf32>
    %182 = vector.multi_reduction <add>, %181, %cst_72 [1] : vector<16x16xf32> to vector<16xf32>
    %183 = vector.shape_cast %182 : vector<16xf32> to vector<16x1xf32>
    %184 = math.sqrt %183 : vector<16x1xf32>
    %cst_73 = arith.constant 1.000000e-15 : f32
    %185 = vector.broadcast %cst_73 : f32 to vector<16x1xf32>
    %186 = arith.maximumf %184, %185 : vector<16x1xf32>
    %cst_74 = arith.constant 0.995999991 : f32
    %187 = vector.broadcast %cst_74 : f32 to vector<16x1xf32>
    %188 = arith.cmpf ogt, %186, %187 : vector<16x1xf32>
    %189 = vector.broadcast %186 : vector<16x1xf32> to vector<16x16xf32>
    %190 = arith.divf %180, %189 : vector<16x16xf32>
    %cst_75 = arith.constant 0.995999991 : f32
    %191 = vector.broadcast %cst_75 : f32 to vector<16x16xf32>
    %192 = arith.mulf %190, %191 : vector<16x16xf32>
    %193 = vector.shape_cast %188 : vector<16x1xi1> to vector<16x1xi1>
    %194 = vector.broadcast %193 : vector<16x1xi1> to vector<16x16xi1>
    %195 = arith.select %194, %192, %180 : vector<16x16xi1>, vector<16x16xf32>
    %196 = arith.mulf %130, %130 : vector<16x32xf32>
    %cst_76 = arith.constant dense<0.000000e+00> : vector<16xf32>
    %197 = vector.multi_reduction <add>, %196, %cst_76 [1] : vector<16x32xf32> to vector<16xf32>
    %198 = vector.shape_cast %197 : vector<16xf32> to vector<16x1xf32>
    %199 = math.sqrt %198 : vector<16x1xf32>
    %cst_77 = arith.constant 1.000000e-15 : f32
    %200 = vector.broadcast %cst_77 : f32 to vector<16x1xf32>
    %201 = arith.maximumf %199, %200 : vector<16x1xf32>
    %cst_78 = arith.constant 1.000000e+00 : f32
    %202 = vector.broadcast %cst_78 : f32 to vector<16x1xf32>
    %203 = arith.mulf %202, %201 : vector<16x1xf32>
    %cst_79 = arith.constant -0.99999988 : f32
    %cst_80 = arith.constant 0.99999988 : f32
    %204 = vector.broadcast %cst_79 : f32 to vector<16x1xf32>
    %205 = arith.maximumf %204, %203 : vector<16x1xf32>
    %206 = vector.broadcast %cst_80 : f32 to vector<16x1xf32>
    %207 = arith.minimumf %206, %205 : vector<16x1xf32>
    %208 = math.log1p %207 : vector<16x1xf32>
    %cst_81 = arith.constant 0.000000e+00 : f32
    %209 = vector.broadcast %cst_81 : f32 to vector<16x1xf32>
    %210 = arith.subf %209, %207 : vector<16x1xf32>
    %211 = math.log1p %210 : vector<16x1xf32>
    %212 = arith.subf %208, %211 : vector<16x1xf32>
    %cst_82 = arith.constant 5.000000e-01 : f32
    %213 = vector.broadcast %cst_82 : f32 to vector<16x1xf32>
    %214 = arith.mulf %213, %212 : vector<16x1xf32>
    %215 = vector.broadcast %214 : vector<16x1xf32> to vector<16x32xf32>
    %216 = arith.mulf %215, %130 : vector<16x32xf32>
    %cst_83 = arith.constant 1.000000e+00 : f32
    %217 = vector.broadcast %cst_83 : f32 to vector<16x1xf32>
    %218 = arith.mulf %217, %201 : vector<16x1xf32>
    %219 = vector.broadcast %218 : vector<16x1xf32> to vector<16x32xf32>
    %220 = arith.divf %216, %219 : vector<16x32xf32>
    %221 = arith.subf %220, %9 : vector<16x32xf32>
    %222 = arith.mulf %221, %221 : vector<16x32xf32>
    %cst_84 = arith.constant dense<0.000000e+00> : vector<16xf32>
    %223 = vector.multi_reduction <add>, %222, %cst_84 [1] : vector<16x32xf32> to vector<16xf32>
    %224 = vector.shape_cast %223 : vector<16xf32> to vector<16x1xf32>
    %225 = vector.broadcast %224 : vector<16x1xf32> to vector<16x32xf32>
    %226 = arith.mulf %225, %220 : vector<16x32xf32>
    %227 = arith.negf %226 : vector<16x32xf32>
    %228 = math.exp %227 : vector<16x32xf32>
    %cst_85 = arith.constant 1.000000e+00 : f32
    %229 = vector.broadcast %cst_85 : f32 to vector<16x32xf32>
    %230 = arith.addf %229, %228 : vector<16x32xf32>
    %231 = arith.divf %229, %230 : vector<16x32xf32>
    %232 = arith.mulf %9, %231 : vector<16x32xf32>
    %233 = arith.negf %232 : vector<16x32xf32>
    %234 = math.exp %233 : vector<16x32xf32>
    %cst_86 = arith.constant 1.000000e+00 : f32
    %235 = vector.broadcast %cst_86 : f32 to vector<16x32xf32>
    %236 = arith.addf %235, %234 : vector<16x32xf32>
    %237 = arith.divf %235, %236 : vector<16x32xf32>
    %238 = arith.mulf %232, %237 : vector<16x32xf32>
    %cst_87 = arith.constant 0.000000e+00 : f32
    %239 = vector.broadcast %cst_87 : f32 to vector<16x32xf32>
    %240 = arith.maximumf %238, %239 : vector<16x32xf32>
    %cst_88 = arith.constant 5.000000e-01 : f32
    %241 = vector.broadcast %cst_88 : f32 to vector<16x32xf32>
    %242 = arith.mulf %241, %240 : vector<16x32xf32>
    %243 = arith.addf %9, %242 : vector<16x32xf32>
    %244 = arith.mulf %195, %195 : vector<16x16xf32>
    %cst_89 = arith.constant dense<0.000000e+00> : vector<16xf32>
    %245 = vector.multi_reduction <add>, %244, %cst_89 [1] : vector<16x16xf32> to vector<16xf32>
    %246 = vector.shape_cast %245 : vector<16xf32> to vector<16x1xf32>
    %247 = math.sqrt %246 : vector<16x1xf32>
    %cst_90 = arith.constant 1.000000e-15 : f32
    %248 = vector.broadcast %cst_90 : f32 to vector<16x1xf32>
    %249 = arith.maximumf %247, %248 : vector<16x1xf32>
    %cst_91 = arith.constant 1.000000e+00 : f32
    %250 = vector.broadcast %cst_91 : f32 to vector<16x1xf32>
    %251 = arith.mulf %250, %249 : vector<16x1xf32>
    %cst_92 = arith.constant -0.99999988 : f32
    %cst_93 = arith.constant 0.99999988 : f32
    %252 = vector.broadcast %cst_92 : f32 to vector<16x1xf32>
    %253 = arith.maximumf %252, %251 : vector<16x1xf32>
    %254 = vector.broadcast %cst_93 : f32 to vector<16x1xf32>
    %255 = arith.minimumf %254, %253 : vector<16x1xf32>
    %256 = math.log1p %255 : vector<16x1xf32>
    %cst_94 = arith.constant 0.000000e+00 : f32
    %257 = vector.broadcast %cst_94 : f32 to vector<16x1xf32>
    %258 = arith.subf %257, %255 : vector<16x1xf32>
    %259 = math.log1p %258 : vector<16x1xf32>
    %260 = arith.subf %256, %259 : vector<16x1xf32>
    %cst_95 = arith.constant 5.000000e-01 : f32
    %261 = vector.broadcast %cst_95 : f32 to vector<16x1xf32>
    %262 = arith.mulf %261, %260 : vector<16x1xf32>
    %263 = vector.broadcast %262 : vector<16x1xf32> to vector<16x16xf32>
    %264 = arith.mulf %263, %195 : vector<16x16xf32>
    %cst_96 = arith.constant 1.000000e+00 : f32
    %265 = vector.broadcast %cst_96 : f32 to vector<16x1xf32>
    %266 = arith.mulf %265, %249 : vector<16x1xf32>
    %267 = vector.broadcast %266 : vector<16x1xf32> to vector<16x16xf32>
    %268 = arith.divf %264, %267 : vector<16x16xf32>
    %269 = arith.subf %268, %25 : vector<16x16xf32>
    %270 = arith.mulf %269, %269 : vector<16x16xf32>
    %cst_97 = arith.constant dense<0.000000e+00> : vector<16xf32>
    %271 = vector.multi_reduction <add>, %270, %cst_97 [1] : vector<16x16xf32> to vector<16xf32>
    %272 = vector.shape_cast %271 : vector<16xf32> to vector<16x1xf32>
    %273 = vector.broadcast %272 : vector<16x1xf32> to vector<16x16xf32>
    %274 = arith.mulf %273, %268 : vector<16x16xf32>
    %275 = arith.negf %274 : vector<16x16xf32>
    %276 = math.exp %275 : vector<16x16xf32>
    %cst_98 = arith.constant 1.000000e+00 : f32
    %277 = vector.broadcast %cst_98 : f32 to vector<16x16xf32>
    %278 = arith.addf %277, %276 : vector<16x16xf32>
    %279 = arith.divf %277, %278 : vector<16x16xf32>
    %280 = arith.mulf %25, %279 : vector<16x16xf32>
    %281 = arith.negf %280 : vector<16x16xf32>
    %282 = math.exp %281 : vector<16x16xf32>
    %cst_99 = arith.constant 1.000000e+00 : f32
    %283 = vector.broadcast %cst_99 : f32 to vector<16x16xf32>
    %284 = arith.addf %283, %282 : vector<16x16xf32>
    %285 = arith.divf %283, %284 : vector<16x16xf32>
    %286 = arith.mulf %280, %285 : vector<16x16xf32>
    %cst_100 = arith.constant 0.000000e+00 : f32
    %287 = vector.broadcast %cst_100 : f32 to vector<16x16xf32>
    %288 = arith.maximumf %286, %287 : vector<16x16xf32>
    %cst_101 = arith.constant 5.000000e-01 : f32
    %289 = vector.broadcast %cst_101 : f32 to vector<16x16xf32>
    %290 = arith.mulf %289, %288 : vector<16x16xf32>
    %291 = arith.addf %25, %290 : vector<16x16xf32>
    %292 = arith.mulf %243, %243 : vector<16x32xf32>
    %cst_102 = arith.constant dense<0.000000e+00> : vector<16xf32>
    %293 = vector.multi_reduction <add>, %292, %cst_102 [1] : vector<16x32xf32> to vector<16xf32>
    %294 = vector.shape_cast %293 : vector<16xf32> to vector<16x1xf32>
    %295 = math.sqrt %294 : vector<16x1xf32>
    %cst_103 = arith.constant 1.000000e-15 : f32
    %296 = vector.broadcast %cst_103 : f32 to vector<16x1xf32>
    %297 = arith.maximumf %295, %296 : vector<16x1xf32>
    %cst_104 = arith.constant 9.99999996E-13 : f32
    %298 = vector.broadcast %cst_104 : f32 to vector<16x1xf32>
    %299 = arith.maximumf %297, %298 : vector<16x1xf32>
    %300 = vector.broadcast %299 : vector<16x1xf32> to vector<16x32xf32>
    %301 = arith.divf %243, %300 : vector<16x32xf32>
    %302 = arith.mulf %231, %231 : vector<16x32xf32>
    %cst_105 = arith.constant dense<0.000000e+00> : vector<16xf32>
    %303 = vector.multi_reduction <add>, %302, %cst_105 [1] : vector<16x32xf32> to vector<16xf32>
    %304 = vector.shape_cast %303 : vector<16xf32> to vector<16x1xf32>
    %305 = math.sqrt %304 : vector<16x1xf32>
    %cst_106 = arith.constant 1.000000e-15 : f32
    %306 = vector.broadcast %cst_106 : f32 to vector<16x1xf32>
    %307 = arith.maximumf %305, %306 : vector<16x1xf32>
    %cst_107 = arith.constant 9.99999996E-13 : f32
    %308 = vector.broadcast %cst_107 : f32 to vector<16x1xf32>
    %309 = arith.maximumf %307, %308 : vector<16x1xf32>
    %310 = vector.broadcast %309 : vector<16x1xf32> to vector<16x32xf32>
    %311 = arith.divf %231, %310 : vector<16x32xf32>
    %cst_108 = arith.constant dense<0.000000e+00> : vector<16x16xf32>
    %312 = tpu.matmul %301, %311, %cst_108 {dimension_numbers = #tpu.dot_dimension_numbers<[1], [1], [0], [0], [0, 0, 1, 0], [], []>} : vector<16x32xf32>, vector<16x32xf32>, vector<16x16xf32> -> vector<16x16xf32>
    %cst_109 = arith.constant 5.000000e-01 : f32
    %313 = vector.broadcast %cst_109 : f32 to vector<16x16xf32>
    %314 = arith.divf %312, %313 : vector<16x16xf32>
    %315 = math.exp %314 : vector<16x16xf32>
    %cst_110 = arith.constant dense<0.000000e+00> : vector<16x16xf32>
    %316 = tpu.matmul %301, %301, %cst_110 {dimension_numbers = #tpu.dot_dimension_numbers<[1], [1], [0], [0], [0, 0, 1, 0], [], []>} : vector<16x32xf32>, vector<16x32xf32>, vector<16x16xf32> -> vector<16x16xf32>
    %cst_111 = arith.constant 5.000000e-01 : f32
    %317 = vector.broadcast %cst_111 : f32 to vector<16x16xf32>
    %318 = arith.divf %316, %317 : vector<16x16xf32>
    %319 = math.exp %318 : vector<16x16xf32>
    %cst_112 = arith.constant dense<0.000000e+00> : vector<16x16xf32>
    %320 = tpu.matmul %311, %311, %cst_112 {dimension_numbers = #tpu.dot_dimension_numbers<[1], [1], [0], [0], [0, 0, 1, 0], [], []>} : vector<16x32xf32>, vector<16x32xf32>, vector<16x16xf32> -> vector<16x16xf32>
    %cst_113 = arith.constant 5.000000e-01 : f32
    %321 = vector.broadcast %cst_113 : f32 to vector<16x16xf32>
    %322 = arith.divf %320, %321 : vector<16x16xf32>
    %323 = math.exp %322 : vector<16x16xf32>
    %cst_114 = arith.constant 5.000000e-01 : f32
    %324 = vector.broadcast %cst_114 : f32 to vector<16x16xf32>
    %325 = arith.cmpf ogt, %315, %324 : vector<16x16xf32>
    %cst_115 = arith.constant 0.000000e+00 : f32
    %326 = vector.broadcast %cst_115 : f32 to vector<16x16xf32>
    %327 = arith.select %325, %315, %326 : vector<16x16xi1>, vector<16x16xf32>
    %cst_116 = arith.constant dense<0.000000e+00> : vector<16xf32>
    %328 = vector.multi_reduction <add>, %327, %cst_116 [1] : vector<16x16xf32> to vector<16xf32>
    %329 = vector.shape_cast %328 : vector<16xf32> to vector<16x1xf32>
    %cst_117 = arith.constant 5.000000e-01 : f32
    %330 = vector.broadcast %cst_117 : f32 to vector<16x16xf32>
    %331 = arith.cmpf ogt, %319, %330 : vector<16x16xf32>
    %cst_118 = arith.constant 0.000000e+00 : f32
    %332 = vector.broadcast %cst_118 : f32 to vector<16x16xf32>
    %333 = arith.select %331, %319, %332 : vector<16x16xi1>, vector<16x16xf32>
    %cst_119 = arith.constant dense<0.000000e+00> : vector<16xf32>
    %334 = vector.multi_reduction <add>, %333, %cst_119 [1] : vector<16x16xf32> to vector<16xf32>
    %335 = vector.shape_cast %334 : vector<16xf32> to vector<16x1xf32>
    %336 = arith.addf %329, %335 : vector<16x1xf32>
    %cst_120 = arith.constant 5.000000e-01 : f32
    %337 = vector.broadcast %cst_120 : f32 to vector<16x16xf32>
    %338 = arith.cmpf ogt, %323, %337 : vector<16x16xf32>
    %cst_121 = arith.constant 0.000000e+00 : f32
    %339 = vector.broadcast %cst_121 : f32 to vector<16x16xf32>
    %340 = arith.select %338, %323, %339 : vector<16x16xi1>, vector<16x16xf32>
    %cst_122 = arith.constant dense<0.000000e+00> : vector<16xf32>
    %341 = vector.multi_reduction <add>, %340, %cst_122 [1] : vector<16x16xf32> to vector<16xf32>
    %342 = vector.shape_cast %341 : vector<16xf32> to vector<16x1xf32>
    %343 = arith.addf %336, %342 : vector<16x1xf32>
    %cst_123 = arith.constant 5.000000e-01 : f32
    %344 = vector.broadcast %cst_123 : f32 to vector<16x16xf32>
    %345 = arith.cmpf olt, %315, %344 : vector<16x16xf32>
    %cst_124 = arith.constant 0.000000e+00 : f32
    %346 = vector.broadcast %cst_124 : f32 to vector<16x16xf32>
    %347 = arith.select %345, %315, %346 : vector<16x16xi1>, vector<16x16xf32>
    %cst_125 = arith.constant dense<0.000000e+00> : vector<16xf32>
    %348 = vector.multi_reduction <add>, %347, %cst_125 [1] : vector<16x16xf32> to vector<16xf32>
    %349 = vector.shape_cast %348 : vector<16xf32> to vector<16x1xf32>
    %350 = arith.addf %343, %349 : vector<16x1xf32>
    %cst_126 = arith.constant 5.000000e-01 : f32
    %351 = vector.broadcast %cst_126 : f32 to vector<16x16xf32>
    %352 = arith.cmpf olt, %319, %351 : vector<16x16xf32>
    %cst_127 = arith.constant 0.000000e+00 : f32
    %353 = vector.broadcast %cst_127 : f32 to vector<16x16xf32>
    %354 = arith.select %352, %319, %353 : vector<16x16xi1>, vector<16x16xf32>
    %cst_128 = arith.constant dense<0.000000e+00> : vector<16xf32>
    %355 = vector.multi_reduction <add>, %354, %cst_128 [1] : vector<16x16xf32> to vector<16xf32>
    %356 = vector.shape_cast %355 : vector<16xf32> to vector<16x1xf32>
    %357 = arith.addf %350, %356 : vector<16x1xf32>
    %cst_129 = arith.constant 5.000000e-01 : f32
    %358 = vector.broadcast %cst_129 : f32 to vector<16x16xf32>
    %359 = arith.cmpf olt, %323, %358 : vector<16x16xf32>
    %cst_130 = arith.constant 0.000000e+00 : f32
    %360 = vector.broadcast %cst_130 : f32 to vector<16x16xf32>
    %361 = arith.select %359, %323, %360 : vector<16x16xi1>, vector<16x16xf32>
    %cst_131 = arith.constant dense<0.000000e+00> : vector<16xf32>
    %362 = vector.multi_reduction <add>, %361, %cst_131 [1] : vector<16x16xf32> to vector<16xf32>
    %363 = vector.shape_cast %362 : vector<16xf32> to vector<16x1xf32>
    %364 = arith.addf %357, %363 : vector<16x1xf32>
    %365 = arith.divf %343, %364 : vector<16x1xf32>
    %366 = math.log %365 : vector<16x1xf32>
    %cst_132 = arith.constant 0.000000e+00 : f32
    %367 = vector.broadcast %cst_132 : f32 to vector<16x1xf32>
    %368 = arith.subf %367, %366 : vector<16x1xf32>
    %369 = vector.shape_cast %368 : vector<16x1xf32> to vector<1x16x1xf32>
    %cst_133 = arith.constant dense<0.000000e+00> : vector<1xf32>
    %370 = vector.multi_reduction <add>, %369, %cst_133 [1, 2] : vector<1x16x1xf32> to vector<1xf32>
    %371 = vector.shape_cast %370 : vector<1xf32> to vector<1x1x1xf32>
    %372 = vector.extract %371[0, 0, 0] : f32 from vector<1x1x1xf32>
    %cst_134 = arith.constant 1.600000e+01 : f32
    %373 = arith.divf %372, %cst_134 : f32
    %374 = arith.mulf %291, %291 : vector<16x16xf32>
    %cst_135 = arith.constant dense<0.000000e+00> : vector<16xf32>
    %375 = vector.multi_reduction <add>, %374, %cst_135 [1] : vector<16x16xf32> to vector<16xf32>
    %376 = vector.shape_cast %375 : vector<16xf32> to vector<16x1xf32>
    %377 = math.sqrt %376 : vector<16x1xf32>
    %cst_136 = arith.constant 1.000000e-15 : f32
    %378 = vector.broadcast %cst_136 : f32 to vector<16x1xf32>
    %379 = arith.maximumf %377, %378 : vector<16x1xf32>
    %cst_137 = arith.constant 9.99999996E-13 : f32
    %380 = vector.broadcast %cst_137 : f32 to vector<16x1xf32>
    %381 = arith.maximumf %379, %380 : vector<16x1xf32>
    %382 = vector.broadcast %381 : vector<16x1xf32> to vector<16x16xf32>
    %383 = arith.divf %291, %382 : vector<16x16xf32>
    %384 = arith.mulf %279, %279 : vector<16x16xf32>
    %cst_138 = arith.constant dense<0.000000e+00> : vector<16xf32>
    %385 = vector.multi_reduction <add>, %384, %cst_138 [1] : vector<16x16xf32> to vector<16xf32>
    %386 = vector.shape_cast %385 : vector<16xf32> to vector<16x1xf32>
    %387 = math.sqrt %386 : vector<16x1xf32>
    %cst_139 = arith.constant 1.000000e-15 : f32
    %388 = vector.broadcast %cst_139 : f32 to vector<16x1xf32>
    %389 = arith.maximumf %387, %388 : vector<16x1xf32>
    %cst_140 = arith.constant 9.99999996E-13 : f32
    %390 = vector.broadcast %cst_140 : f32 to vector<16x1xf32>
    %391 = arith.maximumf %389, %390 : vector<16x1xf32>
    %392 = vector.broadcast %391 : vector<16x1xf32> to vector<16x16xf32>
    %393 = arith.divf %279, %392 : vector<16x16xf32>
    %cst_141 = arith.constant dense<0.000000e+00> : vector<16x16xf32>
    %394 = tpu.matmul %383, %393, %cst_141 {dimension_numbers = #tpu.dot_dimension_numbers<[1], [1], [0], [0], [0, 0, 1, 0], [], []>} : vector<16x16xf32>, vector<16x16xf32>, vector<16x16xf32> -> vector<16x16xf32>
    %cst_142 = arith.constant 5.000000e-01 : f32
    %395 = vector.broadcast %cst_142 : f32 to vector<16x16xf32>
    %396 = arith.divf %394, %395 : vector<16x16xf32>
    %397 = math.exp %396 : vector<16x16xf32>
    %cst_143 = arith.constant dense<0.000000e+00> : vector<16x16xf32>
    %398 = tpu.matmul %383, %383, %cst_143 {dimension_numbers = #tpu.dot_dimension_numbers<[1], [1], [0], [0], [0, 0, 1, 0], [], []>} : vector<16x16xf32>, vector<16x16xf32>, vector<16x16xf32> -> vector<16x16xf32>
    %cst_144 = arith.constant 5.000000e-01 : f32
    %399 = vector.broadcast %cst_144 : f32 to vector<16x16xf32>
    %400 = arith.divf %398, %399 : vector<16x16xf32>
    %401 = math.exp %400 : vector<16x16xf32>
    %cst_145 = arith.constant dense<0.000000e+00> : vector<16x16xf32>
    %402 = tpu.matmul %393, %393, %cst_145 {dimension_numbers = #tpu.dot_dimension_numbers<[1], [1], [0], [0], [0, 0, 1, 0], [], []>} : vector<16x16xf32>, vector<16x16xf32>, vector<16x16xf32> -> vector<16x16xf32>
    %cst_146 = arith.constant 5.000000e-01 : f32
    %403 = vector.broadcast %cst_146 : f32 to vector<16x16xf32>
    %404 = arith.divf %402, %403 : vector<16x16xf32>
    %405 = math.exp %404 : vector<16x16xf32>
    %cst_147 = arith.constant 5.000000e-01 : f32
    %406 = vector.broadcast %cst_147 : f32 to vector<16x16xf32>
    %407 = arith.cmpf ogt, %397, %406 : vector<16x16xf32>
    %cst_148 = arith.constant 0.000000e+00 : f32
    %408 = vector.broadcast %cst_148 : f32 to vector<16x16xf32>
    %409 = arith.select %407, %397, %408 : vector<16x16xi1>, vector<16x16xf32>
    %cst_149 = arith.constant dense<0.000000e+00> : vector<16xf32>
    %410 = vector.multi_reduction <add>, %409, %cst_149 [1] : vector<16x16xf32> to vector<16xf32>
    %411 = vector.shape_cast %410 : vector<16xf32> to vector<16x1xf32>
    %cst_150 = arith.constant 5.000000e-01 : f32
    %412 = vector.broadcast %cst_150 : f32 to vector<16x16xf32>
    %413 = arith.cmpf ogt, %401, %412 : vector<16x16xf32>
    %cst_151 = arith.constant 0.000000e+00 : f32
    %414 = vector.broadcast %cst_151 : f32 to vector<16x16xf32>
    %415 = arith.select %413, %401, %414 : vector<16x16xi1>, vector<16x16xf32>
    %cst_152 = arith.constant dense<0.000000e+00> : vector<16xf32>
    %416 = vector.multi_reduction <add>, %415, %cst_152 [1] : vector<16x16xf32> to vector<16xf32>
    %417 = vector.shape_cast %416 : vector<16xf32> to vector<16x1xf32>
    %418 = arith.addf %411, %417 : vector<16x1xf32>
    %cst_153 = arith.constant 5.000000e-01 : f32
    %419 = vector.broadcast %cst_153 : f32 to vector<16x16xf32>
    %420 = arith.cmpf ogt, %405, %419 : vector<16x16xf32>
    %cst_154 = arith.constant 0.000000e+00 : f32
    %421 = vector.broadcast %cst_154 : f32 to vector<16x16xf32>
    %422 = arith.select %420, %405, %421 : vector<16x16xi1>, vector<16x16xf32>
    %cst_155 = arith.constant dense<0.000000e+00> : vector<16xf32>
    %423 = vector.multi_reduction <add>, %422, %cst_155 [1] : vector<16x16xf32> to vector<16xf32>
    %424 = vector.shape_cast %423 : vector<16xf32> to vector<16x1xf32>
    %425 = arith.addf %418, %424 : vector<16x1xf32>
    %cst_156 = arith.constant 5.000000e-01 : f32
    %426 = vector.broadcast %cst_156 : f32 to vector<16x16xf32>
    %427 = arith.cmpf olt, %397, %426 : vector<16x16xf32>
    %cst_157 = arith.constant 0.000000e+00 : f32
    %428 = vector.broadcast %cst_157 : f32 to vector<16x16xf32>
    %429 = arith.select %427, %397, %428 : vector<16x16xi1>, vector<16x16xf32>
    %cst_158 = arith.constant dense<0.000000e+00> : vector<16xf32>
    %430 = vector.multi_reduction <add>, %429, %cst_158 [1] : vector<16x16xf32> to vector<16xf32>
    %431 = vector.shape_cast %430 : vector<16xf32> to vector<16x1xf32>
    %432 = arith.addf %425, %431 : vector<16x1xf32>
    %cst_159 = arith.constant 5.000000e-01 : f32
    %433 = vector.broadcast %cst_159 : f32 to vector<16x16xf32>
    %434 = arith.cmpf olt, %401, %433 : vector<16x16xf32>
    %cst_160 = arith.constant 0.000000e+00 : f32
    %435 = vector.broadcast %cst_160 : f32 to vector<16x16xf32>
    %436 = arith.select %434, %401, %435 : vector<16x16xi1>, vector<16x16xf32>
    %cst_161 = arith.constant dense<0.000000e+00> : vector<16xf32>
    %437 = vector.multi_reduction <add>, %436, %cst_161 [1] : vector<16x16xf32> to vector<16xf32>
    %438 = vector.shape_cast %437 : vector<16xf32> to vector<16x1xf32>
    %439 = arith.addf %432, %438 : vector<16x1xf32>
    %cst_162 = arith.constant 5.000000e-01 : f32
    %440 = vector.broadcast %cst_162 : f32 to vector<16x16xf32>
    %441 = arith.cmpf olt, %405, %440 : vector<16x16xf32>
    %cst_163 = arith.constant 0.000000e+00 : f32
    %442 = vector.broadcast %cst_163 : f32 to vector<16x16xf32>
    %443 = arith.select %441, %405, %442 : vector<16x16xi1>, vector<16x16xf32>
    %cst_164 = arith.constant dense<0.000000e+00> : vector<16xf32>
    %444 = vector.multi_reduction <add>, %443, %cst_164 [1] : vector<16x16xf32> to vector<16xf32>
    %445 = vector.shape_cast %444 : vector<16xf32> to vector<16x1xf32>
    %446 = arith.addf %439, %445 : vector<16x1xf32>
    %447 = arith.divf %425, %446 : vector<16x1xf32>
    %448 = math.log %447 : vector<16x1xf32>
    %cst_165 = arith.constant 0.000000e+00 : f32
    %449 = vector.broadcast %cst_165 : f32 to vector<16x1xf32>
    %450 = arith.subf %449, %448 : vector<16x1xf32>
    %451 = vector.shape_cast %450 : vector<16x1xf32> to vector<1x16x1xf32>
    %cst_166 = arith.constant dense<0.000000e+00> : vector<1xf32>
    %452 = vector.multi_reduction <add>, %451, %cst_166 [1, 2] : vector<1x16x1xf32> to vector<1xf32>
    %453 = vector.shape_cast %452 : vector<1xf32> to vector<1x1x1xf32>
    %454 = vector.extract %453[0, 0, 0] : f32 from vector<1x1x1xf32>
    %cst_167 = arith.constant 1.600000e+01 : f32
    %455 = arith.divf %454, %cst_167 : f32
    %456 = arith.addf %373, %455 : f32
    %c0_168 = arith.constant 0 : index
    %c0_169 = arith.constant 0 : index
    %457 = vector.load %arg10[%c0_168, %c0_169] : memref<16x32xf32, #tpu.memory_space<vmem>>, vector<16x32xf32>
    tpu.vector_store %arg10[%c0_168, %c0_169], %243 {strides = array<i32>} : memref<16x32xf32, #tpu.memory_space<vmem>>, vector<16x32xf32>,
    %c0_170 = arith.constant 0 : index
    %c0_171 = arith.constant 0 : index
    %458 = vector.load %arg11[%c0_170, %c0_171] : memref<16x16xf32, #tpu.memory_space<vmem>>, vector<16x16xf32>
    tpu.vector_store %arg11[%c0_170, %c0_171], %291 {strides = array<i32>} : memref<16x16xf32, #tpu.memory_space<vmem>>, vector<16x16xf32>,
    %c0_172 = arith.constant 0 : index
    %459 = memref.load %arg12[%c0_172] : memref<1xf32, #tpu.memory_space<smem>>
    memref.store %456, %arg12[%c0_172] : memref<1xf32, #tpu.memory_space<smem>>
    return
  }
}

</mosaic_0001>

<llo_original>
// kernel: tpu_custom_call.1
$region0: #{tpu_custom_call.1}
  #allocation0 [shape = 'u32[]', space=smem, size = 0x4, offset = 0x4, fixed_abs, tag = 'smem constant byte address 0x4 - core index']
  #allocation1 [shape = 'u32[144,128]{1,0:T(1,128)}', space=vmem, size = 0x12000, scoped, tag = 'internal scratch']
  %s0 = inlined_call_operand.vmem [shape: f32[16,32], index: 0, kind: input, shape index: {}]
  %s1 = inlined_call_operand.hbm [shape: f32[16,16], index: 1, kind: input, shape index: {}]
  %s2 = inlined_call_operand.vmem [shape: f32[32,32], index: 2, kind: input, shape index: {}]
  %s3 = inlined_call_operand.vmem [shape: f32[1,32], index: 3, kind: input, shape index: {}]
  %s4 = inlined_call_operand.vmem [shape: f32[32,16], index: 4, kind: input, shape index: {}]
  %s5 = inlined_call_operand.vmem [shape: f32[1,16], index: 5, kind: input, shape index: {}]
  %s6 = inlined_call_operand.vmem [shape: f32[32,32], index: 6, kind: input, shape index: {}]
  %s7 = inlined_call_operand.vmem [shape: f32[1,32], index: 7, kind: input, shape index: {}]
  %s8 = inlined_call_operand.vmem [shape: f32[32,16], index: 8, kind: input, shape index: {}]
  %s9 = inlined_call_operand.vmem [shape: f32[1,16], index: 9, kind: input, shape index: {}]
  %s10 = inlined_call_operand.hbm [shape: f32[16,32], index: 10, kind: output, shape index: {0}]
  %s11 = inlined_call_operand.hbm [shape: f32[16,16], index: 11, kind: output, shape index: {1}]
  %s12 = inlined_call_operand.hbm [shape: f32[1], index: 12, kind: output, shape index: {2}]
  %13 = xla_tuple %s10, %s11, %s12
  %s14 = sld [smem:[#allocation0]]
  $region70: #{tpu_custom_call.1} parent=0
    _
  %s16 = ssub.s32 1, %s14
  %s17 = scalar_select 0, %s16, %s14
  $region1: #{tpu_custom_call.1} parent=0
    #allocation2 [shape = 'u8[8192]{0}', space=vmem, size = 0x2000, scoped, tag = 'input window, operand 1, single buffered']
    #allocation3 [shape = 's32[1]{0}', space=sflag, size = 0x4, scoped, tag = 'scoped memory for tpu_custom_call.1']
    #allocation4 [shape = 's32[1]{0}', space=sflag, size = 0x4, scoped, tag = 'scoped memory for tpu_custom_call.1']
    #allocation5 [shape = 's32[1]{0}', space=sflag, size = 0x4, scoped, tag = 'scoped memory for tpu_custom_call.1']
    #allocation6 [shape = 'u8[8192]{0}', space=vmem, size = 0x2000, scoped, tag = 'output window, operand 0, single buffered']
    #allocation7 [shape = 'u8[8192]{0}', space=vmem, size = 0x2000, scoped, tag = 'output window, operand 1, single buffered']
    #allocation8 [shape = 's32[1]{0}', space=sflag, size = 0x4, scoped, tag = 'scoped memory for tpu_custom_call.1']
    #allocation9 [shape = 'u8[512]{0}', space=smem, size = 0x200, scoped, tag = 'output window, operand 2, single buffered']
    %18 = vsyncpa [#allocation3], 0
    %19 = vsyncpa [#allocation4], 0
    %20 = vsyncpa [#allocation8], 0
    %21 = vsyncpa [#allocation5], 0
    // Predicated region
    $region2: #{tpu_custom_call.1} parent=1 // pred_check
      _
    $region3: #{tpu_custom_call.1} parent=1 // pred_check_branch
      %23 = sbr.rel (0) target = $region5
    $region4: #{tpu_custom_call.1} parent=1 // pred_region
      _
    $region5: #{tpu_custom_call.1} parent=1 // pred_fallthru
      _
    // Predicated region
    $region6: #{tpu_custom_call.1} parent=1 // pred_check
      _
    $region7: #{tpu_custom_call.1} parent=1 // pred_check_branch
      %25 = sbr.rel (0) target = $region9
    $region8: #{tpu_custom_call.1} parent=1 // pred_region
      %s27 = ssub.s32 256, 256
      %28 = vsyncadd [#allocation3], %s27
      %s29 = sshll.u32 [#allocation2], 4
      %s30 = int_to_ptr.vmem [resolvable:$true] %s29
      %35 = dma.hbm_to_vmem [thread:$0]  %s1, 256, %s30, [#allocation3], 128, 128, 8
    $region9: #{tpu_custom_call.1} parent=1 // pred_fallthru
      _
    // Predicated region
    $region10: #{tpu_custom_call.1} parent=1 // pred_check
      _
    $region11: #{tpu_custom_call.1} parent=1 // pred_check_branch
      %37 = sbr.rel (0) target = $region13
    $region12: #{tpu_custom_call.1} parent=1 // pred_region
      _
    $region13: #{tpu_custom_call.1} parent=1 // pred_fallthru
      _
    // Predicated region
    $region14: #{tpu_custom_call.1} parent=1 // pred_check
      _
    $region15: #{tpu_custom_call.1} parent=1 // pred_check_branch
      %39 = sbr.rel (0) target = $region17
    $region16: #{tpu_custom_call.1} parent=1 // pred_region
      _
    $region17: #{tpu_custom_call.1} parent=1 // pred_fallthru
      _
    // Predicated region
    $region18: #{tpu_custom_call.1} parent=1 // pred_check
      _
    $region19: #{tpu_custom_call.1} parent=1 // pred_check_branch
      %41 = sbr.rel (0) target = $region21
    $region20: #{tpu_custom_call.1} parent=1 // pred_region
      _
    $region21: #{tpu_custom_call.1} parent=1 // pred_fallthru
      _
    // Predicated region
    $region22: #{tpu_custom_call.1} parent=1 // pred_check
      _
    $region23: #{tpu_custom_call.1} parent=1 // pred_check_branch
      %43 = sbr.rel (0) target = $region25
    $region24: #{tpu_custom_call.1} parent=1 // pred_region
      _
    $region25: #{tpu_custom_call.1} parent=1 // pred_fallthru
      _
    // Predicated region
    $region26: #{tpu_custom_call.1} parent=1 // pred_check
      _
    $region27: #{tpu_custom_call.1} parent=1 // pred_check_branch
      %45 = sbr.rel (0) target = $region29
    $region28: #{tpu_custom_call.1} parent=1 // pred_region
      _
    $region29: #{tpu_custom_call.1} parent=1 // pred_fallthru
      _
    // Predicated region
    $region30: #{tpu_custom_call.1} parent=1 // pred_check
      _
    $region31: #{tpu_custom_call.1} parent=1 // pred_check_branch
      %47 = sbr.rel (0) target = $region33
    $region32: #{tpu_custom_call.1} parent=1 // pred_region
      _
    $region33: #{tpu_custom_call.1} parent=1 // pred_fallthru
      _
    // Predicated region
    $region34: #{tpu_custom_call.1} parent=1 // pred_check
      _
    $region35: #{tpu_custom_call.1} parent=1 // pred_check_branch
      %49 = sbr.rel (0) target = $region37
    $region36: #{tpu_custom_call.1} parent=1 // pred_region
      _
    $region37: #{tpu_custom_call.1} parent=1 // pred_fallthru
      _
    // Predicated region
    $region38: #{tpu_custom_call.1} parent=1 // pred_check
      _
    $region39: #{tpu_custom_call.1} parent=1 // pred_check_branch
      %51 = sbr.rel (0) target = $region41
    $region40: #{tpu_custom_call.1} parent=1 // pred_region
      _
    $region41: #{tpu_custom_call.1} parent=1 // pred_fallthru
      _
    // Predicated region
    $region42: #{tpu_custom_call.1} parent=1 // pred_check
      _
    $region43: #{tpu_custom_call.1} parent=1 // pred_check_branch
      %53 = sbr.rel (0) target = $region45
    $region44: #{tpu_custom_call.1} parent=1 // pred_region
      %54 = dma.done [#allocation3], 256
    $region45: #{tpu_custom_call.1} parent=1 // pred_fallthru
      _
    %v55 = vld [vmem:[%s0] sm:$0xff]
    %v56 = vld [vmem:[%s0 + $0x8] sm:$0xff]
    %v57 = vld [vmem:[#allocation2] sm:$0xff]
    %v58 = vld [vmem:[#allocation2 + $0x8] sm:$0xff]
    %v59 = vld [vmem:[%s2] sm:$0xff]
    %v60 = vld [vmem:[%s2 + $0x8] sm:$0xff]
    %v61 = vld [vmem:[%s2 + $0x10] sm:$0xff]
    %v62 = vld [vmem:[%s2 + $0x18] sm:$0xff]
    %vm63 = vcmask 261120
    %v65 = vsel %vm63, %v55, 0
    %v68 = vsel %vm63, %v56, 0
    %70 = vmatprep.subr.mxu0 0.0
    %71 = vmatpush1.msra.mxu0 0.0
    %72 = vmatprep.subr.mxu0 0.0
    %73 = vmatpush1.msra.mxu0 0.0
    %74 = vmatprep.subr.mxu0 0.0
    %75 = vmatpush1.msra.mxu0 0.0
    %76 = vmatprep.subr.mxu0 0.0
    %77 = vmatpush1.msra.mxu0 0.0
    %78 = vmatprep.subr.mxu0 0.0
    %79 = vmatpush1.msra.mxu0 0.0
    %80 = vmatprep.subr.mxu0 0.0
    %81 = vmatpush1.msra.mxu0 0.0
    %82 = vmatprep.subr.mxu0 0.0
    %83 = vmatpush1.msra.mxu0 0.0
    %84 = vmatprep.subr.mxu0 0.0
    %85 = vmatpush1.msra.mxu0 0.0
    %86 = vmatprep.subr.mxu0 0.0
    %87 = vmatpush1.msra.mxu0 0.0
    %88 = vmatprep.subr.mxu0 0.0
    %89 = vmatpush1.msra.mxu0 0.0
    %90 = vmatprep.subr.mxu0 0.0
    %91 = vmatpush1.msra.mxu0 0.0
    %92 = vmatprep.subr.mxu0 0.0
    %93 = vmatpush1.msra.mxu0 0.0
    %94 = vmatprep.subr.mxu0 0.0
    %95 = vmatpush1.msra.mxu0 %v62
    %96 = vmatprep.subr.mxu0 0.0
    %97 = vmatpush1.msra.mxu0 %v61
    %98 = vmatprep.subr.mxu0 0.0
    %99 = vmatpush1.msra.mxu0 %v60
    %100 = vmatprep.subr.mxu0 0.0
    %101 = vmatpush1.msra.mxu0 %v59
    %102 = vmatprep.subr.mxu0 0.0
    %103 = vmatpush2.msra.mxu0 0.0
    %104 = vmatprep.subr.mxu0 0.0
    %105 = vmatpush2.msra.mxu0 0.0
    %106 = vmatprep.subr.mxu0 0.0
    %107 = vmatpush2.msra.mxu0 0.0
    %108 = vmatprep.subr.mxu0 0.0
    %109 = vmatpush2.msra.mxu0 0.0
    %110 = vmatprep.subr.mxu0 0.0
    %111 = vmatpush2.msra.mxu0 0.0
    %112 = vmatprep.subr.mxu0 0.0
    %113 = vmatpush2.msra.mxu0 0.0
    %114 = vmatprep.subr.mxu0 0.0
    %115 = vmatpush2.msra.mxu0 0.0
    %116 = vmatprep.subr.mxu0 0.0
    %117 = vmatpush2.msra.mxu0 0.0
    %118 = vmatprep.subr.mxu0 0.0
    %119 = vmatpush2.msra.mxu0 0.0
    %120 = vmatprep.subr.mxu0 0.0
    %121 = vmatpush2.msra.mxu0 0.0
    %122 = vmatprep.subr.mxu0 0.0
    %123 = vmatpush2.msra.mxu0 0.0
    %124 = vmatprep.subr.mxu0 0.0
    %125 = vmatpush2.msra.mxu0 0.0
    %126 = vmatprep.subr.mxu0 0.0
    %127 = vmatpush2.msra.mxu0 0.0
    %128 = vmatprep.subr.mxu0 0.0
    %129 = vmatpush2.msra.mxu0 0.0
    %130 = vmatprep.subr.mxu0 0.0
    %131 = vmatpush2.msra.mxu0 0.0
    %132 = vmatprep.subr.mxu0 0.0
    %133 = vmatpush2.msra.mxu0 0.0
    %134 = vmatprep.mubr.f32.mxu0 0.0
    %135 = vmatmul.mubr.f32.gmra.mxu0 %v65
    %v136 = vpop.f32.mrf.mxu0
    %v137 = vadd.f32 0.0, %v136
    %v138 = vpop.f32.mrf.mxu0
    %139 = vmatprep.mubr.f32.mxu0 0.0
    %140 = vmatmul.mubr.f32.gmra.mxu0 %v68
    %v141 = vpop.f32.mrf.mxu0
    %v142 = vadd.f32 0.0, %v141
    %v143 = vpop.f32.mrf.mxu0
    %144 = vdwg.mxu0
    %v145 = vld [vmem:[%s3] sm:$0x1]
    %v147 = vlaneseq
    %v148 = vshrl.u32 %v147, 7
    %v149 = vsub.s32 0, %v148
    %v150 = vrot.slane %v145, %v149
    %vm152 = vcmask 130048
    %v154 = vsel %vm152, %v57, 0
    %v157 = vsel %vm152, %v58, 0
    %159 = vmatprep.subr.mxu0 0.0
    %160 = vmatpush1.msra.mxu0 0.0
    %161 = vmatprep.subr.mxu0 0.0
    %162 = vmatpush1.msra.mxu0 0.0
    %163 = vmatprep.subr.mxu0 0.0
    %164 = vmatpush1.msra.mxu0 0.0
    %165 = vmatprep.subr.mxu0 0.0
    %166 = vmatpush1.msra.mxu0 0.0
    %167 = vmatprep.subr.mxu0 0.0
    %168 = vmatpush1.msra.mxu0 0.0
    %169 = vmatprep.subr.mxu0 0.0
    %170 = vmatpush1.msra.mxu0 0.0
    %171 = vmatprep.subr.mxu0 0.0
    %172 = vmatpush1.msra.mxu0 0.0
    %173 = vmatprep.subr.mxu0 0.0
    %174 = vmatpush1.msra.mxu0 0.0
    %175 = vmatprep.subr.mxu0 0.0
    %176 = vmatpush1.msra.mxu0 0.0
    %177 = vmatprep.subr.mxu0 0.0
    %178 = vmatpush1.msra.mxu0 0.0
    %179 = vmatprep.subr.mxu0 0.0
    %180 = vmatpush1.msra.mxu0 0.0
    %181 = vmatprep.subr.mxu0 0.0
    %182 = vmatpush1.msra.mxu0 0.0
    %183 = vmatprep.subr.mxu0 0.0
    %184 = vmatpush1.msra.mxu0 0.0
    %185 = vmatprep.subr.mxu0 0.0
    %186 = vmatpush1.msra.mxu0 0.0
    %187 = vmatprep.subr.mxu0 0.0
    %188 = vmatpush1.msra.mxu0 %v142
    %189 = vmatprep.subr.mxu0 0.0
    %190 = vmatpush1.msra.mxu0 %v137
    %191 = vmatprep.subr.mxu0 0.0
    %192 = vmatpush2.msra.mxu0 0.0
    %193 = vmatprep.subr.mxu0 0.0
    %194 = vmatpush2.msra.mxu0 0.0
    %195 = vmatprep.subr.mxu0 0.0
    %196 = vmatpush2.msra.mxu0 0.0
    %197 = vmatprep.subr.mxu0 0.0
    %198 = vmatpush2.msra.mxu0 0.0
    %199 = vmatprep.subr.mxu0 0.0
    %200 = vmatpush2.msra.mxu0 0.0
    %201 = vmatprep.subr.mxu0 0.0
    %202 = vmatpush2.msra.mxu0 0.0
    %203 = vmatprep.subr.mxu0 0.0
    %204 = vmatpush2.msra.mxu0 0.0
    %205 = vmatprep.subr.mxu0 0.0
    %206 = vmatpush2.msra.mxu0 0.0
    %207 = vmatprep.subr.mxu0 0.0
    %208 = vmatpush2.msra.mxu0 0.0
    %209 = vmatprep.subr.mxu0 0.0
    %210 = vmatpush2.msra.mxu0 0.0
    %211 = vmatprep.subr.mxu0 0.0
    %212 = vmatpush2.msra.mxu0 0.0
    %213 = vmatprep.subr.mxu0 0.0
    %214 = vmatpush2.msra.mxu0 0.0
    %215 = vmatprep.subr.mxu0 0.0
    %216 = vmatpush2.msra.mxu0 0.0
    %217 = vmatprep.subr.mxu0 0.0
    %218 = vmatpush2.msra.mxu0 0.0
    %219 = vmatprep.subr.mxu0 0.0
    %220 = vmatpush2.msra.mxu0 0.0
    %221 = vmatprep.subr.mxu0 0.0
    %222 = vmatpush2.msra.mxu0 0.0
    %223 = vmatprep.mubr.f32.mxu0 0.0
    %224 = vmatmul.mubr.f32.gmra.mxu0 %v154
    %v225 = vpop.f32.mrf.mxu0
    %v226 = vadd.f32 %v150, %v225
    %v227 = vpop.f32.mrf.mxu0
    %228 = vmatprep.mubr.f32.mxu0 0.0
    %229 = vmatmul.mubr.f32.gmra.mxu0 %v157
    %v230 = vpop.f32.mrf.mxu0
    %v231 = vadd.f32 %v150, %v230
    %v232 = vpop.f32.mrf.mxu0
    %233 = vdwg.mxu0
    %v234 = vmax.f32 %v226, 0.0
    %v235 = vmax.f32 %v231, 0.0
    %v236 = vld [vmem:[%s4] sm:$0xff]
    %v237 = vld [vmem:[%s4 + $0x8] sm:$0xff]
    %v238 = vld [vmem:[%s4 + $0x10] sm:$0xff]
    %v239 = vld [vmem:[%s4 + $0x18] sm:$0xff]
    %v241 = vsel %vm63, %v234, 0
    %v244 = vsel %vm63, %v235, 0
    %246 = vmatprep.subr.mxu0 0.0
    %247 = vmatpush1.msra.mxu0 0.0
    %248 = vmatprep.subr.mxu0 0.0
    %249 = vmatpush1.msra.mxu0 0.0
    %250 = vmatprep.subr.mxu0 0.0
    %251 = vmatpush1.msra.mxu0 0.0
    %252 = vmatprep.subr.mxu0 0.0
    %253 = vmatpush1.msra.mxu0 0.0
    %254 = vmatprep.subr.mxu0 0.0
    %255 = vmatpush1.msra.mxu0 0.0
    %256 = vmatprep.subr.mxu0 0.0
    %257 = vmatpush1.msra.mxu0 0.0
    %258 = vmatprep.subr.mxu0 0.0
    %259 = vmatpush1.msra.mxu0 0.0
    %260 = vmatprep.subr.mxu0 0.0
    %261 = vmatpush1.msra.mxu0 0.0
    %262 = vmatprep.subr.mxu0 0.0
    %263 = vmatpush1.msra.mxu0 0.0
    %264 = vmatprep.subr.mxu0 0.0
    %265 = vmatpush1.msra.mxu0 0.0
    %266 = vmatprep.subr.mxu0 0.0
    %267 = vmatpush1.msra.mxu0 0.0
    %268 = vmatprep.subr.mxu0 0.0
    %269 = vmatpush1.msra.mxu0 0.0
    %270 = vmatprep.subr.mxu0 0.0
    %271 = vmatpush1.msra.mxu0 %v239
    %272 = vmatprep.subr.mxu0 0.0
    %273 = vmatpush1.msra.mxu0 %v238
    %274 = vmatprep.subr.mxu0 0.0
    %275 = vmatpush1.msra.mxu0 %v237
    %276 = vmatprep.subr.mxu0 0.0
    %277 = vmatpush1.msra.mxu0 %v236
    %278 = vmatprep.subr.mxu0 0.0
    %279 = vmatpush2.msra.mxu0 0.0
    %280 = vmatprep.subr.mxu0 0.0
    %281 = vmatpush2.msra.mxu0 0.0
    %282 = vmatprep.subr.mxu0 0.0
    %283 = vmatpush2.msra.mxu0 0.0
    %284 = vmatprep.subr.mxu0 0.0
    %285 = vmatpush2.msra.mxu0 0.0
    %286 = vmatprep.subr.mxu0 0.0
    %287 = vmatpush2.msra.mxu0 0.0
    %288 = vmatprep.subr.mxu0 0.0
    %289 = vmatpush2.msra.mxu0 0.0
    %290 = vmatprep.subr.mxu0 0.0
    %291 = vmatpush2.msra.mxu0 0.0
    %292 = vmatprep.subr.mxu0 0.0
    %293 = vmatpush2.msra.mxu0 0.0
    %294 = vmatprep.subr.mxu0 0.0
    %295 = vmatpush2.msra.mxu0 0.0
    %296 = vmatprep.subr.mxu0 0.0
    %297 = vmatpush2.msra.mxu0 0.0
    %298 = vmatprep.subr.mxu0 0.0
    %299 = vmatpush2.msra.mxu0 0.0
    %300 = vmatprep.subr.mxu0 0.0
    %301 = vmatpush2.msra.mxu0 0.0
    %302 = vmatprep.subr.mxu0 0.0
    %303 = vmatpush2.msra.mxu0 0.0
    %304 = vmatprep.subr.mxu0 0.0
    %305 = vmatpush2.msra.mxu0 0.0
    %306 = vmatprep.subr.mxu0 0.0
    %307 = vmatpush2.msra.mxu0 0.0
    %308 = vmatprep.subr.mxu0 0.0
    %309 = vmatpush2.msra.mxu0 0.0
    %310 = vmatprep.mubr.f32.mxu0 0.0
    %311 = vmatmul.mubr.f32.gmra.mxu0 %v241
    %v312 = vpop.f32.mrf.mxu0
    %v313 = vadd.f32 0.0, %v312
    %v314 = vpop.f32.mrf.mxu0
    %315 = vmatprep.mubr.f32.mxu0 0.0
    %316 = vmatmul.mubr.f32.gmra.mxu0 %v244
    %v317 = vpop.f32.mrf.mxu0
    %v318 = vadd.f32 0.0, %v317
    %v319 = vpop.f32.mrf.mxu0
    %320 = vdwg.mxu0
    %v321 = vld [vmem:[%s5] sm:$0x1]
    %v323 = vlaneseq
    %v324 = vshrl.u32 %v323, 7
    %v325 = vsub.s32 0, %v324
    %v326 = vrot.slane %v321, %v325
    %328 = vmatprep.subr.mxu0 0.0
    %329 = vmatpush1.msra.mxu0 0.0
    %330 = vmatprep.subr.mxu0 0.0
    %331 = vmatpush1.msra.mxu0 0.0
    %332 = vmatprep.subr.mxu0 0.0
    %333 = vmatpush1.msra.mxu0 0.0
    %334 = vmatprep.subr.mxu0 0.0
    %335 = vmatpush1.msra.mxu0 0.0
    %336 = vmatprep.subr.mxu0 0.0
    %337 = vmatpush1.msra.mxu0 0.0
    %338 = vmatprep.subr.mxu0 0.0
    %339 = vmatpush1.msra.mxu0 0.0
    %340 = vmatprep.subr.mxu0 0.0
    %341 = vmatpush1.msra.mxu0 0.0
    %342 = vmatprep.subr.mxu0 0.0
    %343 = vmatpush1.msra.mxu0 0.0
    %344 = vmatprep.subr.mxu0 0.0
    %345 = vmatpush1.msra.mxu0 0.0
    %346 = vmatprep.subr.mxu0 0.0
    %347 = vmatpush1.msra.mxu0 0.0
    %348 = vmatprep.subr.mxu0 0.0
    %349 = vmatpush1.msra.mxu0 0.0
    %350 = vmatprep.subr.mxu0 0.0
    %351 = vmatpush1.msra.mxu0 0.0
    %352 = vmatprep.subr.mxu0 0.0
    %353 = vmatpush1.msra.mxu0 0.0
    %354 = vmatprep.subr.mxu0 0.0
    %355 = vmatpush1.msra.mxu0 0.0
    %356 = vmatprep.subr.mxu0 0.0
    %357 = vmatpush1.msra.mxu0 %v318
    %358 = vmatprep.subr.mxu0 0.0
    %359 = vmatpush1.msra.mxu0 %v313
    %360 = vmatprep.subr.mxu0 0.0
    %361 = vmatpush2.msra.mxu0 0.0
    %362 = vmatprep.subr.mxu0 0.0
    %363 = vmatpush2.msra.mxu0 0.0
    %364 = vmatprep.subr.mxu0 0.0
    %365 = vmatpush2.msra.mxu0 0.0
    %366 = vmatprep.subr.mxu0 0.0
    %367 = vmatpush2.msra.mxu0 0.0
    %368 = vmatprep.subr.mxu0 0.0
    %369 = vmatpush2.msra.mxu0 0.0
    %370 = vmatprep.subr.mxu0 0.0
    %371 = vmatpush2.msra.mxu0 0.0
    %372 = vmatprep.subr.mxu0 0.0
    %373 = vmatpush2.msra.mxu0 0.0
    %374 = vmatprep.subr.mxu0 0.0
    %375 = vmatpush2.msra.mxu0 0.0
    %376 = vmatprep.subr.mxu0 0.0
    %377 = vmatpush2.msra.mxu0 0.0
    %378 = vmatprep.subr.mxu0 0.0
    %379 = vmatpush2.msra.mxu0 0.0
    %380 = vmatprep.subr.mxu0 0.0
    %381 = vmatpush2.msra.mxu0 0.0
    %382 = vmatprep.subr.mxu0 0.0
    %383 = vmatpush2.msra.mxu0 0.0
    %384 = vmatprep.subr.mxu0 0.0
    %385 = vmatpush2.msra.mxu0 0.0
    %386 = vmatprep.subr.mxu0 0.0
    %387 = vmatpush2.msra.mxu0 0.0
    %388 = vmatprep.subr.mxu0 0.0
    %389 = vmatpush2.msra.mxu0 0.0
    %390 = vmatprep.subr.mxu0 0.0
    %391 = vmatpush2.msra.mxu0 0.0
    %392 = vmatprep.mubr.f32.mxu0 0.0
    %393 = vmatmul.mubr.f32.gmra.mxu0 %v154
    %v394 = vpop.f32.mrf.mxu0
    %v395 = vadd.f32 %v326, %v394
    %v396 = vpop.f32.mrf.mxu0
    %397 = vmatprep.mubr.f32.mxu0 0.0
    %398 = vmatmul.mubr.f32.gmra.mxu0 %v157
    %v399 = vpop.f32.mrf.mxu0
    %v400 = vadd.f32 %v326, %v399
    %v401 = vpop.f32.mrf.mxu0
    %402 = vdwg.mxu0
    %v403 = vsel %vm152, %v395, -inf
    %404 = vmax.xlane.f32.xlu0 %v403
    %v405 = vpop.xlane.xlu0 %404
    %v406 = vsel %vm152, %v400, -inf
    %407 = vmax.xlane.f32.xlu0 %v406
    %v408 = vpop.xlane.xlu0 %407
    %v409 = vsub.f32 %v395, %v405
    %v410 = vsub.f32 %v400, %v408
    %v411 = vmul.f32 %v409, 1.442695
    %v412 = vpow.pop %v411
    %v413 = vmul.f32 %v410, 1.442695
    %v414 = vpow.pop %v413
    %v415 = vsel %vm152, %v412, 0.0
    %416 = vadd.xlane.f32.xlu0 %v415
    %v417 = vpop.xlane.xlu0 %416
    %v418 = vsel %vm152, %v414, 0.0
    %419 = vadd.xlane.f32.xlu0 %v418
    %v420 = vpop.xlane.xlu0 %419
    %v421 = vlog2.pop %v417
    %v422 = vmul.f32 %v421, 0.6931472
    %v423 = vlog2.pop %v420
    %v424 = vmul.f32 %v423, 0.6931472
    %v425 = vsub.f32 %v409, %v422
    %v426 = vsub.f32 %v410, %v424
    %v427 = vsel %vm152, %v57, 0.0
    %428 = vadd.xlane.f32.xlu0 %v427
    %v429 = vpop.xlane.xlu0 %428
    %v430 = vsel %vm152, %v58, 0.0
    %431 = vadd.xlane.f32.xlu0 %v430
    %v432 = vpop.xlane.xlu0 %431
    %vm433 = vcmp.gt.f32.partialorder %v429, 0.0
    %vm434 = vcmp.gt.f32.partialorder %v432, 0.0
    %v435 = vmax.f32 %v429, 1e-15
    %v436 = vmax.f32 %v432, 1e-15
    %v437 = vrcp.pop %v435
    %v438 = vmul.f32 1.0, %v437
    %v439 = vrcp.pop %v436
    %v440 = vmul.f32 1.0, %v439
    %v441 = vsel %vm433, %v438, 0.0
    %v442 = vsel %vm434, %v440, 0.0
    %v443 = vmul.f32 %v55, %v55
    %v444 = vmul.f32 %v56, %v56
    %v445 = vsel %vm63, %v443, 0.0
    %446 = vadd.xlane.f32.xlu0 %v445
    %v447 = vpop.xlane.xlu0 %446
    %v448 = vsel %vm63, %v444, 0.0
    %449 = vadd.xlane.f32.xlu0 %v448
    %v450 = vpop.xlane.xlu0 %449
    %v451 = vrsqrt.pop %v447
    %v452 = vmul.f32 %v447, %v451
    %vm453 = vcmp.eq.f32.partialorder %v447, inf
    %v454 = vsel %vm453, %v447, %v452
    %vm455 = vcmp.eq.f32.partialorder %v447, 0.0
    %v456 = vand.u32 %v447, 2147483648
    %v457 = vsel %vm455, %v456, %v454
    %v458 = vrsqrt.pop %v450
    %v459 = vmul.f32 %v450, %v458
    %vm460 = vcmp.eq.f32.partialorder %v450, inf
    %v461 = vsel %vm460, %v450, %v459
    %vm462 = vcmp.eq.f32.partialorder %v450, 0.0
    %v463 = vand.u32 %v450, 2147483648
    %v464 = vsel %vm462, %v463, %v461
    %v465 = vmax.f32 %v457, 1e-15
    %v466 = vmax.f32 %v464, 1e-15
    %v467 = vtanh.pop %v465
    %v468 = vtanh.pop %v466
    %v469 = vmul.f32 %v467, %v55
    %v470 = vmul.f32 %v468, %v56
    %v471 = vrcp.pop %v465
    %v472 = vmul.f32 %v469, %v471
    %v473 = vrcp.pop %v466
    %v474 = vmul.f32 %v470, %v473
    %v475 = vmul.f32 %v472, %v472
    %v476 = vmul.f32 %v474, %v474
    %v477 = vsel %vm63, %v475, 0.0
    %478 = vadd.xlane.f32.xlu0 %v477
    %v479 = vpop.xlane.xlu0 %478
    %v480 = vsel %vm63, %v476, 0.0
    %481 = vadd.xlane.f32.xlu0 %v480
    %v482 = vpop.xlane.xlu0 %481
    %v483 = vrsqrt.pop %v479
    %v484 = vmul.f32 %v479, %v483
    %vm485 = vcmp.eq.f32.partialorder %v479, inf
    %v486 = vsel %vm485, %v479, %v484
    %vm487 = vcmp.eq.f32.partialorder %v479, 0.0
    %v488 = vand.u32 %v479, 2147483648
    %v489 = vsel %vm487, %v488, %v486
    %v490 = vrsqrt.pop %v482
    %v491 = vmul.f32 %v482, %v490
    %vm492 = vcmp.eq.f32.partialorder %v482, inf
    %v493 = vsel %vm492, %v482, %v491
    %vm494 = vcmp.eq.f32.partialorder %v482, 0.0
    %v495 = vand.u32 %v482, 2147483648
    %v496 = vsel %vm494, %v495, %v493
    %v497 = vmax.f32 %v489, 1e-15
    %v498 = vmax.f32 %v496, 1e-15
    %vm499 = vcmp.gt.f32.partialorder %v497, 0.996
    %vm500 = vcmp.gt.f32.partialorder %v498, 0.996
    %v501 = vrcp.pop %v497
    %v502 = vmul.f32 %v472, %v501
    %v503 = vrcp.pop %v498
    %v504 = vmul.f32 %v474, %v503
    %v505 = vmul.f32 %v502, 0.996
    %v506 = vmul.f32 %v504, 0.996
    %v507 = vsel %vm499, 1, 0
    %v508 = vsel %vm500, 1, 0
    %vm509 = vcmp.eq.s32.totalorder %v507, 1
    %vm510 = vcmp.eq.s32.totalorder %v508, 1
    %v511 = vsel %vm509, %v505, %v472
    %v512 = vsel %vm510, %v506, %v474
    %v513 = vld [vmem:[%s6] sm:$0xff]
    %v514 = vld [vmem:[%s6 + $0x8] sm:$0xff]
    %v515 = vld [vmem:[%s6 + $0x10] sm:$0xff]
    %v516 = vld [vmem:[%s6 + $0x18] sm:$0xff]
    %v517 = vld [vmem:[%s7] sm:$0x1]
    %v518 = vmul.f32 %v511, %v511
    %v519 = vmul.f32 %v512, %v512
    %v520 = vsel %vm63, %v518, 0.0
    %521 = vadd.xlane.f32.xlu0 %v520
    %v522 = vpop.xlane.xlu0 %521
    %v523 = vsel %vm63, %v519, 0.0
    %524 = vadd.xlane.f32.xlu0 %v523
    %v525 = vpop.xlane.xlu0 %524
    %v526 = vrsqrt.pop %v522
    %v527 = vmul.f32 %v522, %v526
    %vm528 = vcmp.eq.f32.partialorder %v522, inf
    %v529 = vsel %vm528, %v522, %v527
    %vm530 = vcmp.eq.f32.partialorder %v522, 0.0
    %v531 = vand.u32 %v522, 2147483648
    %v532 = vsel %vm530, %v531, %v529
    %v533 = vrsqrt.pop %v525
    %v534 = vmul.f32 %v525, %v533
    %vm535 = vcmp.eq.f32.partialorder %v525, inf
    %v536 = vsel %vm535, %v525, %v534
    %vm537 = vcmp.eq.f32.partialorder %v525, 0.0
    %v538 = vand.u32 %v525, 2147483648
    %v539 = vsel %vm537, %v538, %v536
    %v540 = vmax.f32 %v532, 1e-15
    %v541 = vmax.f32 %v539, 1e-15
    %v542 = vmax.f32 %v540, -0.9999999
    %v543 = vmax.f32 %v541, -0.9999999
    %v544 = vmin.f32 %v542, 0.9999999
    %v545 = vmin.f32 %v543, 0.9999999
    %v546 = vadd.f32 %v544, 1.0
    %v547 = vlog2.pop %v546
    %v548 = vmul.f32 %v547, 0.6931472
    %v549 = vmul.f32 -0.5, %v544
    %v550 = vadd.f32 %v549, 1.0
    %v551 = vmul.f32 %v550, %v544
    %v552 = vand.u32 2147483647, %v544
    %vm553 = vcmp.lt.f32.partialorder %v552, 0.0004427343
    %v554 = vsel %vm553, %v551, %v548
    %v555 = vadd.f32 %v545, 1.0
    %v556 = vlog2.pop %v555
    %v557 = vmul.f32 %v556, 0.6931472
    %v558 = vmul.f32 -0.5, %v545
    %v559 = vadd.f32 %v558, 1.0
    %v560 = vmul.f32 %v559, %v545
    %v561 = vand.u32 2147483647, %v545
    %vm562 = vcmp.lt.f32.partialorder %v561, 0.0004427343
    %v563 = vsel %vm562, %v560, %v557
    %v564 = vsub.f32 0.0, %v544
    %v565 = vsub.f32 0.0, %v545
    %v566 = vadd.f32 %v564, 1.0
    %v567 = vlog2.pop %v566
    %v568 = vmul.f32 %v567, 0.6931472
    %v569 = vmul.f32 -0.5, %v564
    %v570 = vadd.f32 %v569, 1.0
    %v571 = vmul.f32 %v570, %v564
    %v572 = vand.u32 2147483647, %v564
    %vm573 = vcmp.lt.f32.partialorder %v572, 0.0004427343
    %v574 = vsel %vm573, %v571, %v568
    %v575 = vadd.f32 %v565, 1.0
    %v576 = vlog2.pop %v575
    %v577 = vmul.f32 %v576, 0.6931472
    %v578 = vmul.f32 -0.5, %v565
    %v579 = vadd.f32 %v578, 1.0
    %v580 = vmul.f32 %v579, %v565
    %v581 = vand.u32 2147483647, %v565
    %vm582 = vcmp.lt.f32.partialorder %v581, 0.0004427343
    %v583 = vsel %vm582, %v580, %v577
    %v584 = vsub.f32 %v554, %v574
    %v585 = vsub.f32 %v563, %v583
    %v586 = vmul.f32 %v584, 0.5
    %v587 = vmul.f32 %v585, 0.5
    %v588 = vmul.f32 %v586, %v511
    %v589 = vmul.f32 %v587, %v512
    %v590 = vrcp.pop %v540
    %v591 = vmul.f32 %v588, %v590
    %v592 = vrcp.pop %v541
    %v593 = vmul.f32 %v589, %v592
    %v595 = vsel %vm63, %v591, 0
    %v598 = vsel %vm63, %v593, 0
    %600 = vmatprep.subr.mxu0 0.0
    %601 = vmatpush1.msra.mxu0 0.0
    %602 = vmatprep.subr.mxu0 0.0
    %603 = vmatpush1.msra.mxu0 0.0
    %604 = vmatprep.subr.mxu0 0.0
    %605 = vmatpush1.msra.mxu0 0.0
    %606 = vmatprep.subr.mxu0 0.0
    %607 = vmatpush1.msra.mxu0 0.0
    %608 = vmatprep.subr.mxu0 0.0
    %609 = vmatpush1.msra.mxu0 0.0
    %610 = vmatprep.subr.mxu0 0.0
    %611 = vmatpush1.msra.mxu0 0.0
    %612 = vmatprep.subr.mxu0 0.0
    %613 = vmatpush1.msra.mxu0 0.0
    %614 = vmatprep.subr.mxu0 0.0
    %615 = vmatpush1.msra.mxu0 0.0
    %616 = vmatprep.subr.mxu0 0.0
    %617 = vmatpush1.msra.mxu0 0.0
    %618 = vmatprep.subr.mxu0 0.0
    %619 = vmatpush1.msra.mxu0 0.0
    %620 = vmatprep.subr.mxu0 0.0
    %621 = vmatpush1.msra.mxu0 0.0
    %622 = vmatprep.subr.mxu0 0.0
    %623 = vmatpush1.msra.mxu0 0.0
    %624 = vmatprep.subr.mxu0 0.0
    %625 = vmatpush1.msra.mxu0 %v516
    %626 = vmatprep.subr.mxu0 0.0
    %627 = vmatpush1.msra.mxu0 %v515
    %628 = vmatprep.subr.mxu0 0.0
    %629 = vmatpush1.msra.mxu0 %v514
    %630 = vmatprep.subr.mxu0 0.0
    %631 = vmatpush1.msra.mxu0 %v513
    %632 = vmatprep.subr.mxu0 0.0
    %633 = vmatpush2.msra.mxu0 0.0
    %634 = vmatprep.subr.mxu0 0.0
    %635 = vmatpush2.msra.mxu0 0.0
    %636 = vmatprep.subr.mxu0 0.0
    %637 = vmatpush2.msra.mxu0 0.0
    %638 = vmatprep.subr.mxu0 0.0
    %639 = vmatpush2.msra.mxu0 0.0
    %640 = vmatprep.subr.mxu0 0.0
    %641 = vmatpush2.msra.mxu0 0.0
    %642 = vmatprep.subr.mxu0 0.0
    %643 = vmatpush2.msra.mxu0 0.0
    %644 = vmatprep.subr.mxu0 0.0
    %645 = vmatpush2.msra.mxu0 0.0
    %646 = vmatprep.subr.mxu0 0.0
    %647 = vmatpush2.msra.mxu0 0.0
    %648 = vmatprep.subr.mxu0 0.0
    %649 = vmatpush2.msra.mxu0 0.0
    %650 = vmatprep.subr.mxu0 0.0
    %651 = vmatpush2.msra.mxu0 0.0
    %652 = vmatprep.subr.mxu0 0.0
    %653 = vmatpush2.msra.mxu0 0.0
    %654 = vmatprep.subr.mxu0 0.0
    %655 = vmatpush2.msra.mxu0 0.0
    %656 = vmatprep.subr.mxu0 0.0
    %657 = vmatpush2.msra.mxu0 0.0
    %658 = vmatprep.subr.mxu0 0.0
    %659 = vmatpush2.msra.mxu0 0.0
    %660 = vmatprep.subr.mxu0 0.0
    %661 = vmatpush2.msra.mxu0 0.0
    %662 = vmatprep.subr.mxu0 0.0
    %663 = vmatpush2.msra.mxu0 0.0
    %664 = vmatprep.mubr.f32.mxu0 0.0
    %665 = vmatmul.mubr.f32.gmra.mxu0 %v595
    %v666 = vpop.f32.mrf.mxu0
    %v667 = vadd.f32 0.0, %v666
    %v668 = vpop.f32.mrf.mxu0
    %669 = vmatprep.mubr.f32.mxu0 0.0
    %670 = vmatmul.mubr.f32.gmra.mxu0 %v598
    %v671 = vpop.f32.mrf.mxu0
    %v672 = vadd.f32 0.0, %v671
    %v673 = vpop.f32.mrf.mxu0
    %674 = vdwg.mxu0
    %675 = vmatprep.subr.mxu0 0.0
    %676 = vmatpush1.msra.mxu0 0.0
    %677 = vmatprep.subr.mxu0 0.0
    %678 = vmatpush1.msra.mxu0 0.0
    %679 = vmatprep.subr.mxu0 0.0
    %680 = vmatpush1.msra.mxu0 0.0
    %681 = vmatprep.subr.mxu0 0.0
    %682 = vmatpush1.msra.mxu0 0.0
    %683 = vmatprep.subr.mxu0 0.0
    %684 = vmatpush1.msra.mxu0 0.0
    %685 = vmatprep.subr.mxu0 0.0
    %686 = vmatpush1.msra.mxu0 0.0
    %687 = vmatprep.subr.mxu0 0.0
    %688 = vmatpush1.msra.mxu0 0.0
    %689 = vmatprep.subr.mxu0 0.0
    %690 = vmatpush1.msra.mxu0 0.0
    %691 = vmatprep.subr.mxu0 0.0
    %692 = vmatpush1.msra.mxu0 0.0
    %693 = vmatprep.subr.mxu0 0.0
    %694 = vmatpush1.msra.mxu0 0.0
    %695 = vmatprep.subr.mxu0 0.0
    %696 = vmatpush1.msra.mxu0 0.0
    %697 = vmatprep.subr.mxu0 0.0
    %698 = vmatpush1.msra.mxu0 0.0
    %699 = vmatprep.subr.mxu0 0.0
    %700 = vmatpush1.msra.mxu0 0.0
    %701 = vmatprep.subr.mxu0 0.0
    %702 = vmatpush1.msra.mxu0 0.0
    %703 = vmatprep.subr.mxu0 0.0
    %704 = vmatpush1.msra.mxu0 %v672
    %705 = vmatprep.subr.mxu0 0.0
    %706 = vmatpush1.msra.mxu0 %v667
    %707 = vmatprep.subr.mxu0 0.0
    %708 = vmatpush2.msra.mxu0 0.0
    %709 = vmatprep.subr.mxu0 0.0
    %710 = vmatpush2.msra.mxu0 0.0
    %711 = vmatprep.subr.mxu0 0.0
    %712 = vmatpush2.msra.mxu0 0.0
    %713 = vmatprep.subr.mxu0 0.0
    %714 = vmatpush2.msra.mxu0 0.0
    %715 = vmatprep.subr.mxu0 0.0
    %716 = vmatpush2.msra.mxu0 0.0
    %717 = vmatprep.subr.mxu0 0.0
    %718 = vmatpush2.msra.mxu0 0.0
    %719 = vmatprep.subr.mxu0 0.0
    %720 = vmatpush2.msra.mxu0 0.0
    %721 = vmatprep.subr.mxu0 0.0
    %722 = vmatpush2.msra.mxu0 0.0
    %723 = vmatprep.subr.mxu0 0.0
    %724 = vmatpush2.msra.mxu0 0.0
    %725 = vmatprep.subr.mxu0 0.0
    %726 = vmatpush2.msra.mxu0 0.0
    %727 = vmatprep.subr.mxu0 0.0
    %728 = vmatpush2.msra.mxu0 0.0
    %729 = vmatprep.subr.mxu0 0.0
    %730 = vmatpush2.msra.mxu0 0.0
    %731 = vmatprep.subr.mxu0 0.0
    %732 = vmatpush2.msra.mxu0 0.0
    %733 = vmatprep.subr.mxu0 0.0
    %734 = vmatpush2.msra.mxu0 0.0
    %735 = vmatprep.subr.mxu0 0.0
    %736 = vmatpush2.msra.mxu0 0.0
    %737 = vmatprep.subr.mxu0 0.0
    %738 = vmatpush2.msra.mxu0 0.0
    %739 = vmatprep.mubr.f32.mxu0 0.0
    %740 = vmatmul.mubr.f32.gmra.mxu0 %v154
    %v741 = vpop.f32.mrf.mxu0
    %v742 = vadd.f32 0.0, %v741
    %v743 = vpop.f32.mrf.mxu0
    %744 = vmatprep.mubr.f32.mxu0 0.0
    %745 = vmatmul.mubr.f32.gmra.mxu0 %v157
    %v746 = vpop.f32.mrf.mxu0
    %v747 = vadd.f32 0.0, %v746
    %v748 = vpop.f32.mrf.mxu0
    %749 = vdwg.mxu0
    %v750 = vmul.f32 %v441, %v742
    %v751 = vmul.f32 %v442, %v747
    %v753 = vlaneseq
    %v754 = vshrl.u32 %v753, 7
    %v755 = vsub.s32 0, %v754
    %v756 = vrot.slane %v517, %v755
    %v758 = vadd.f32 %v750, %v756
    %v759 = vadd.f32 %v751, %v756
    %v760 = vmax.f32 %v758, 0.0
    %v761 = vmax.f32 %v759, 0.0
    %v762 = vmul.f32 %v760, %v760
    %v763 = vmul.f32 %v761, %v761
    %v764 = vsel %vm63, %v762, 0.0
    %765 = vadd.xlane.f32.xlu0 %v764
    %v766 = vpop.xlane.xlu0 %765
    %v767 = vsel %vm63, %v763, 0.0
    %768 = vadd.xlane.f32.xlu0 %v767
    %v769 = vpop.xlane.xlu0 %768
    %v770 = vrsqrt.pop %v766
    %v771 = vmul.f32 %v766, %v770
    %vm772 = vcmp.eq.f32.partialorder %v766, inf
    %v773 = vsel %vm772, %v766, %v771
    %vm774 = vcmp.eq.f32.partialorder %v766, 0.0
    %v775 = vand.u32 %v766, 2147483648
    %v776 = vsel %vm774, %v775, %v773
    %v777 = vrsqrt.pop %v769
    %v778 = vmul.f32 %v769, %v777
    %vm779 = vcmp.eq.f32.partialorder %v769, inf
    %v780 = vsel %vm779, %v769, %v778
    %vm781 = vcmp.eq.f32.partialorder %v769, 0.0
    %v782 = vand.u32 %v769, 2147483648
    %v783 = vsel %vm781, %v782, %v780
    %v784 = vmax.f32 %v776, 1e-15
    %v785 = vmax.f32 %v783, 1e-15
    %v786 = vtanh.pop %v784
    %v787 = vtanh.pop %v785
    %v788 = vmul.f32 %v786, %v760
    %v789 = vmul.f32 %v787, %v761
    %v790 = vrcp.pop %v784
    %v791 = vmul.f32 %v788, %v790
    %v792 = vrcp.pop %v785
    %v793 = vmul.f32 %v789, %v792
    %v794 = vmul.f32 %v791, %v791
    %v795 = vmul.f32 %v793, %v793
    %v796 = vsel %vm63, %v794, 0.0
    %797 = vadd.xlane.f32.xlu0 %v796
    %v798 = vpop.xlane.xlu0 %797
    %v799 = vsel %vm63, %v795, 0.0
    %800 = vadd.xlane.f32.xlu0 %v799
    %v801 = vpop.xlane.xlu0 %800
    %v802 = vrsqrt.pop %v798
    %v803 = vmul.f32 %v798, %v802
    %vm804 = vcmp.eq.f32.partialorder %v798, inf
    %v805 = vsel %vm804, %v798, %v803
    %vm806 = vcmp.eq.f32.partialorder %v798, 0.0
    %v807 = vand.u32 %v798, 2147483648
    %v808 = vsel %vm806, %v807, %v805
    %v809 = vrsqrt.pop %v801
    %v810 = vmul.f32 %v801, %v809
    %vm811 = vcmp.eq.f32.partialorder %v801, inf
    %v812 = vsel %vm811, %v801, %v810
    %vm813 = vcmp.eq.f32.partialorder %v801, 0.0
    %v814 = vand.u32 %v801, 2147483648
    %v815 = vsel %vm813, %v814, %v812
    %v816 = vmax.f32 %v808, 1e-15
    %v817 = vmax.f32 %v815, 1e-15
    %vm818 = vcmp.gt.f32.partialorder %v816, 0.996
    %vm819 = vcmp.gt.f32.partialorder %v817, 0.996
    %v820 = vrcp.pop %v816
    %v821 = vmul.f32 %v791, %v820
    %v822 = vrcp.pop %v817
    %v823 = vmul.f32 %v793, %v822
    %v824 = vmul.f32 %v821, 0.996
    %v825 = vmul.f32 %v823, 0.996
    %v826 = vsel %vm818, 1, 0
    %v827 = vsel %vm819, 1, 0
    %vm828 = vcmp.eq.s32.totalorder %v826, 1
    %vm829 = vcmp.eq.s32.totalorder %v827, 1
    %v830 = vsel %vm828, %v824, %v791
    %v831 = vsel %vm829, %v825, %v793
    %v832 = vld [vmem:[%s8] sm:$0xff]
    %v833 = vld [vmem:[%s8 + $0x8] sm:$0xff]
    %v834 = vld [vmem:[%s8 + $0x10] sm:$0xff]
    %v835 = vld [vmem:[%s8 + $0x18] sm:$0xff]
    %v836 = vld [vmem:[%s9] sm:$0x1]
    %v837 = vmul.f32 %v830, %v830
    %v838 = vmul.f32 %v831, %v831
    %v839 = vsel %vm63, %v837, 0.0
    %840 = vadd.xlane.f32.xlu0 %v839
    %v841 = vpop.xlane.xlu0 %840
    %v842 = vsel %vm63, %v838, 0.0
    %843 = vadd.xlane.f32.xlu0 %v842
    %v844 = vpop.xlane.xlu0 %843
    %v845 = vrsqrt.pop %v841
    %v846 = vmul.f32 %v841, %v845
    %vm847 = vcmp.eq.f32.partialorder %v841, inf
    %v848 = vsel %vm847, %v841, %v846
    %vm849 = vcmp.eq.f32.partialorder %v841, 0.0
    %v850 = vand.u32 %v841, 2147483648
    %v851 = vsel %vm849, %v850, %v848
    %v852 = vrsqrt.pop %v844
    %v853 = vmul.f32 %v844, %v852
    %vm854 = vcmp.eq.f32.partialorder %v844, inf
    %v855 = vsel %vm854, %v844, %v853
    %vm856 = vcmp.eq.f32.partialorder %v844, 0.0
    %v857 = vand.u32 %v844, 2147483648
    %v858 = vsel %vm856, %v857, %v855
    %v859 = vmax.f32 %v851, 1e-15
    %v860 = vmax.f32 %v858, 1e-15
    %v861 = vmax.f32 %v859, -0.9999999
    %v862 = vmax.f32 %v860, -0.9999999
    %v863 = vmin.f32 %v861, 0.9999999
    %v864 = vmin.f32 %v862, 0.9999999
    %v865 = vadd.f32 %v863, 1.0
    %v866 = vlog2.pop %v865
    %v867 = vmul.f32 %v866, 0.6931472
    %v868 = vmul.f32 -0.5, %v863
    %v869 = vadd.f32 %v868, 1.0
    %v870 = vmul.f32 %v869, %v863
    %v871 = vand.u32 2147483647, %v863
    %vm872 = vcmp.lt.f32.partialorder %v871, 0.0004427343
    %v873 = vsel %vm872, %v870, %v867
    %v874 = vadd.f32 %v864, 1.0
    %v875 = vlog2.pop %v874
    %v876 = vmul.f32 %v875, 0.6931472
    %v877 = vmul.f32 -0.5, %v864
    %v878 = vadd.f32 %v877, 1.0
    %v879 = vmul.f32 %v878, %v864
    %v880 = vand.u32 2147483647, %v864
    %vm881 = vcmp.lt.f32.partialorder %v880, 0.0004427343
    %v882 = vsel %vm881, %v879, %v876
    %v883 = vsub.f32 0.0, %v863
    %v884 = vsub.f32 0.0, %v864
    %v885 = vadd.f32 %v883, 1.0
    %v886 = vlog2.pop %v885
    %v887 = vmul.f32 %v886, 0.6931472
    %v888 = vmul.f32 -0.5, %v883
    %v889 = vadd.f32 %v888, 1.0
    %v890 = vmul.f32 %v889, %v883
    %v891 = vand.u32 2147483647, %v883
    %vm892 = vcmp.lt.f32.partialorder %v891, 0.0004427343
    %v893 = vsel %vm892, %v890, %v887
    %v894 = vadd.f32 %v884, 1.0
    %v895 = vlog2.pop %v894
    %v896 = vmul.f32 %v895, 0.6931472
    %v897 = vmul.f32 -0.5, %v884
    %v898 = vadd.f32 %v897, 1.0
    %v899 = vmul.f32 %v898, %v884
    %v900 = vand.u32 2147483647, %v884
    %vm901 = vcmp.lt.f32.partialorder %v900, 0.0004427343
    %v902 = vsel %vm901, %v899, %v896
    %v903 = vsub.f32 %v873, %v893
    %v904 = vsub.f32 %v882, %v902
    %v905 = vmul.f32 %v903, 0.5
    %v906 = vmul.f32 %v904, 0.5
    %v907 = vmul.f32 %v905, %v830
    %v908 = vmul.f32 %v906, %v831
    %v909 = vrcp.pop %v859
    %v910 = vmul.f32 %v907, %v909
    %v911 = vrcp.pop %v860
    %v912 = vmul.f32 %v908, %v911
    %v914 = vsel %vm63, %v910, 0
    %v917 = vsel %vm63, %v912, 0
    %919 = vmatprep.subr.mxu0 0.0
    %920 = vmatpush1.msra.mxu0 0.0
    %921 = vmatprep.subr.mxu0 0.0
    %922 = vmatpush1.msra.mxu0 0.0
    %923 = vmatprep.subr.mxu0 0.0
    %924 = vmatpush1.msra.mxu0 0.0
    %925 = vmatprep.subr.mxu0 0.0
    %926 = vmatpush1.msra.mxu0 0.0
    %927 = vmatprep.subr.mxu0 0.0
    %928 = vmatpush1.msra.mxu0 0.0
    %929 = vmatprep.subr.mxu0 0.0
    %930 = vmatpush1.msra.mxu0 0.0
    %931 = vmatprep.subr.mxu0 0.0
    %932 = vmatpush1.msra.mxu0 0.0
    %933 = vmatprep.subr.mxu0 0.0
    %934 = vmatpush1.msra.mxu0 0.0
    %935 = vmatprep.subr.mxu0 0.0
    %936 = vmatpush1.msra.mxu0 0.0
    %937 = vmatprep.subr.mxu0 0.0
    %938 = vmatpush1.msra.mxu0 0.0
    %939 = vmatprep.subr.mxu0 0.0
    %940 = vmatpush1.msra.mxu0 0.0
    %941 = vmatprep.subr.mxu0 0.0
    %942 = vmatpush1.msra.mxu0 0.0
    %943 = vmatprep.subr.mxu0 0.0
    %944 = vmatpush1.msra.mxu0 %v835
    %945 = vmatprep.subr.mxu0 0.0
    %946 = vmatpush1.msra.mxu0 %v834
    %947 = vmatprep.subr.mxu0 0.0
    %948 = vmatpush1.msra.mxu0 %v833
    %949 = vmatprep.subr.mxu0 0.0
    %950 = vmatpush1.msra.mxu0 %v832
    %951 = vmatprep.subr.mxu0 0.0
    %952 = vmatpush2.msra.mxu0 0.0
    %953 = vmatprep.subr.mxu0 0.0
    %954 = vmatpush2.msra.mxu0 0.0
    %955 = vmatprep.subr.mxu0 0.0
    %956 = vmatpush2.msra.mxu0 0.0
    %957 = vmatprep.subr.mxu0 0.0
    %958 = vmatpush2.msra.mxu0 0.0
    %959 = vmatprep.subr.mxu0 0.0
    %960 = vmatpush2.msra.mxu0 0.0
    %961 = vmatprep.subr.mxu0 0.0
    %962 = vmatpush2.msra.mxu0 0.0
    %963 = vmatprep.subr.mxu0 0.0
    %964 = vmatpush2.msra.mxu0 0.0
    %965 = vmatprep.subr.mxu0 0.0
    %966 = vmatpush2.msra.mxu0 0.0
    %967 = vmatprep.subr.mxu0 0.0
    %968 = vmatpush2.msra.mxu0 0.0
    %969 = vmatprep.subr.mxu0 0.0
    %970 = vmatpush2.msra.mxu0 0.0
    %971 = vmatprep.subr.mxu0 0.0
    %972 = vmatpush2.msra.mxu0 0.0
    %973 = vmatprep.subr.mxu0 0.0
    %974 = vmatpush2.msra.mxu0 0.0
    %975 = vmatprep.subr.mxu0 0.0
    %976 = vmatpush2.msra.mxu0 0.0
    %977 = vmatprep.subr.mxu0 0.0
    %978 = vmatpush2.msra.mxu0 0.0
    %979 = vmatprep.subr.mxu0 0.0
    %980 = vmatpush2.msra.mxu0 0.0
    %981 = vmatprep.subr.mxu0 0.0
    %982 = vmatpush2.msra.mxu0 0.0
    %983 = vmatprep.mubr.f32.mxu0 0.0
    %984 = vmatmul.mubr.f32.gmra.mxu0 %v914
    %v985 = vpop.f32.mrf.mxu0
    %v986 = vadd.f32 0.0, %v985
    %v987 = vpop.f32.mrf.mxu0
    %988 = vmatprep.mubr.f32.mxu0 0.0
    %989 = vmatmul.mubr.f32.gmra.mxu0 %v917
    %v990 = vpop.f32.mrf.mxu0
    %v991 = vadd.f32 0.0, %v990
    %v992 = vpop.f32.mrf.mxu0
    %993 = vdwg.mxu0
    %994 = vmatprep.subr.mxu0 0.0
    %995 = vmatpush1.msra.mxu0 0.0
    %996 = vmatprep.subr.mxu0 0.0
    %997 = vmatpush1.msra.mxu0 0.0
    %998 = vmatprep.subr.mxu0 0.0
    %999 = vmatpush1.msra.mxu0 0.0
    %1000 = vmatprep.subr.mxu0 0.0
    %1001 = vmatpush1.msra.mxu0 0.0
    %1002 = vmatprep.subr.mxu0 0.0
    %1003 = vmatpush1.msra.mxu0 0.0
    %1004 = vmatprep.subr.mxu0 0.0
    %1005 = vmatpush1.msra.mxu0 0.0
    %1006 = vmatprep.subr.mxu0 0.0
    %1007 = vmatpush1.msra.mxu0 0.0
    %1008 = vmatprep.subr.mxu0 0.0
    %1009 = vmatpush1.msra.mxu0 0.0
    %1010 = vmatprep.subr.mxu0 0.0
    %1011 = vmatpush1.msra.mxu0 0.0
    %1012 = vmatprep.subr.mxu0 0.0
    %1013 = vmatpush1.msra.mxu0 0.0
    %1014 = vmatprep.subr.mxu0 0.0
    %1015 = vmatpush1.msra.mxu0 0.0
    %1016 = vmatprep.subr.mxu0 0.0
    %1017 = vmatpush1.msra.mxu0 0.0
    %1018 = vmatprep.subr.mxu0 0.0
    %1019 = vmatpush1.msra.mxu0 0.0
    %1020 = vmatprep.subr.mxu0 0.0
    %1021 = vmatpush1.msra.mxu0 0.0
    %1022 = vmatprep.subr.mxu0 0.0
    %1023 = vmatpush1.msra.mxu0 %v991
    %1024 = vmatprep.subr.mxu0 0.0
    %1025 = vmatpush1.msra.mxu0 %v986
    %1026 = vmatprep.subr.mxu0 0.0
    %1027 = vmatpush2.msra.mxu0 0.0
    %1028 = vmatprep.subr.mxu0 0.0
    %1029 = vmatpush2.msra.mxu0 0.0
    %1030 = vmatprep.subr.mxu0 0.0
    %1031 = vmatpush2.msra.mxu0 0.0
    %1032 = vmatprep.subr.mxu0 0.0
    %1033 = vmatpush2.msra.mxu0 0.0
    %1034 = vmatprep.subr.mxu0 0.0
    %1035 = vmatpush2.msra.mxu0 0.0
    %1036 = vmatprep.subr.mxu0 0.0
    %1037 = vmatpush2.msra.mxu0 0.0
    %1038 = vmatprep.subr.mxu0 0.0
    %1039 = vmatpush2.msra.mxu0 0.0
    %1040 = vmatprep.subr.mxu0 0.0
    %1041 = vmatpush2.msra.mxu0 0.0
    %1042 = vmatprep.subr.mxu0 0.0
    %1043 = vmatpush2.msra.mxu0 0.0
    %1044 = vmatprep.subr.mxu0 0.0
    %1045 = vmatpush2.msra.mxu0 0.0
    %1046 = vmatprep.subr.mxu0 0.0
    %1047 = vmatpush2.msra.mxu0 0.0
    %1048 = vmatprep.subr.mxu0 0.0
    %1049 = vmatpush2.msra.mxu0 0.0
    %1050 = vmatprep.subr.mxu0 0.0
    %1051 = vmatpush2.msra.mxu0 0.0
    %1052 = vmatprep.subr.mxu0 0.0
    %1053 = vmatpush2.msra.mxu0 0.0
    %1054 = vmatprep.subr.mxu0 0.0
    %1055 = vmatpush2.msra.mxu0 0.0
    %1056 = vmatprep.subr.mxu0 0.0
    %1057 = vmatpush2.msra.mxu0 0.0
    %1058 = vmatprep.mubr.f32.mxu0 0.0
    %1059 = vmatmul.mubr.f32.gmra.mxu0 %v154
    %v1060 = vpop.f32.mrf.mxu0
    %v1061 = vadd.f32 0.0, %v1060
    %v1062 = vpop.f32.mrf.mxu0
    %1063 = vmatprep.mubr.f32.mxu0 0.0
    %1064 = vmatmul.mubr.f32.gmra.mxu0 %v157
    %v1065 = vpop.f32.mrf.mxu0
    %v1066 = vadd.f32 0.0, %v1065
    %v1067 = vpop.f32.mrf.mxu0
    %1068 = vdwg.mxu0
    %v1069 = vmul.f32 %v441, %v1061
    %v1070 = vmul.f32 %v442, %v1066
    %v1072 = vlaneseq
    %v1073 = vshrl.u32 %v1072, 7
    %v1074 = vsub.s32 0, %v1073
    %v1075 = vrot.slane %v836, %v1074
    %v1077 = vadd.f32 %v1069, %v1075
    %v1078 = vadd.f32 %v1070, %v1075
    %v1079 = vmax.f32 %v1077, 0.0
    %v1080 = vmax.f32 %v1078, 0.0
    %v1081 = vmul.f32 %v1079, %v1079
    %v1082 = vmul.f32 %v1080, %v1080
    %v1083 = vsel %vm152, %v1081, 0.0
    %1084 = vadd.xlane.f32.xlu0 %v1083
    %v1085 = vpop.xlane.xlu0 %1084
    %v1086 = vsel %vm152, %v1082, 0.0
    %1087 = vadd.xlane.f32.xlu0 %v1086
    %v1088 = vpop.xlane.xlu0 %1087
    %v1089 = vrsqrt.pop %v1085
    %v1090 = vmul.f32 %v1085, %v1089
    %vm1091 = vcmp.eq.f32.partialorder %v1085, inf
    %v1092 = vsel %vm1091, %v1085, %v1090
    %vm1093 = vcmp.eq.f32.partialorder %v1085, 0.0
    %v1094 = vand.u32 %v1085, 2147483648
    %v1095 = vsel %vm1093, %v1094, %v1092
    %v1096 = vrsqrt.pop %v1088
    %v1097 = vmul.f32 %v1088, %v1096
    %vm1098 = vcmp.eq.f32.partialorder %v1088, inf
    %v1099 = vsel %vm1098, %v1088, %v1097
    %vm1100 = vcmp.eq.f32.partialorder %v1088, 0.0
    %v1101 = vand.u32 %v1088, 2147483648
    %v1102 = vsel %vm1100, %v1101, %v1099
    %v1103 = vmax.f32 %v1095, 1e-15
    %v1104 = vmax.f32 %v1102, 1e-15
    %v1105 = vtanh.pop %v1103
    %v1106 = vtanh.pop %v1104
    %v1107 = vmul.f32 %v1105, %v1079
    %v1108 = vmul.f32 %v1106, %v1080
    %v1109 = vrcp.pop %v1103
    %v1110 = vmul.f32 %v1107, %v1109
    %v1111 = vrcp.pop %v1104
    %v1112 = vmul.f32 %v1108, %v1111
    %v1113 = vmul.f32 %v1110, %v1110
    %v1114 = vmul.f32 %v1112, %v1112
    %v1115 = vsel %vm152, %v1113, 0.0
    %1116 = vadd.xlane.f32.xlu0 %v1115
    %v1117 = vpop.xlane.xlu0 %1116
    %v1118 = vsel %vm152, %v1114, 0.0
    %1119 = vadd.xlane.f32.xlu0 %v1118
    %v1120 = vpop.xlane.xlu0 %1119
    %v1121 = vrsqrt.pop %v1117
    %v1122 = vmul.f32 %v1117, %v1121
    %vm1123 = vcmp.eq.f32.partialorder %v1117, inf
    %v1124 = vsel %vm1123, %v1117, %v1122
    %vm1125 = vcmp.eq.f32.partialorder %v1117, 0.0
    %v1126 = vand.u32 %v1117, 2147483648
    %v1127 = vsel %vm1125, %v1126, %v1124
    %v1128 = vrsqrt.pop %v1120
    %v1129 = vmul.f32 %v1120, %v1128
    %vm1130 = vcmp.eq.f32.partialorder %v1120, inf
    %v1131 = vsel %vm1130, %v1120, %v1129
    %vm1132 = vcmp.eq.f32.partialorder %v1120, 0.0
    %v1133 = vand.u32 %v1120, 2147483648
    %v1134 = vsel %vm1132, %v1133, %v1131
    %v1135 = vmax.f32 %v1127, 1e-15
    %v1136 = vmax.f32 %v1134, 1e-15
    %vm1137 = vcmp.gt.f32.partialorder %v1135, 0.996
    %vm1138 = vcmp.gt.f32.partialorder %v1136, 0.996
    %v1139 = vrcp.pop %v1135
    %v1140 = vmul.f32 %v1110, %v1139
    %v1141 = vrcp.pop %v1136
    %v1142 = vmul.f32 %v1112, %v1141
    %v1143 = vmul.f32 %v1140, 0.996
    %v1144 = vmul.f32 %v1142, 0.996
    %v1145 = vsel %vm1137, 1, 0
    %v1146 = vsel %vm1138, 1, 0
    %vm1147 = vcmp.eq.s32.totalorder %v1145, 1
    %vm1148 = vcmp.eq.s32.totalorder %v1146, 1
    %v1149 = vsel %vm1147, %v1143, %v1110
    %v1150 = vsel %vm1148, %v1144, %v1112
    %v1151 = vsub.f32 %v910, %v234
    %v1152 = vsub.f32 %v912, %v235
    %v1153 = vmul.f32 %v1151, %v1151
    %v1154 = vmul.f32 %v1152, %v1152
    %v1155 = vsel %vm63, %v1153, 0.0
    %1156 = vadd.xlane.f32.xlu0 %v1155
    %v1157 = vpop.xlane.xlu0 %1156
    %v1158 = vsel %vm63, %v1154, 0.0
    %1159 = vadd.xlane.f32.xlu0 %v1158
    %v1160 = vpop.xlane.xlu0 %1159
    %v1161 = vmul.f32 %v1157, %v910
    %v1162 = vmul.f32 %v1160, %v912
    %v1163 = vxor.u32 %v1161, 2147483648
    %v1164 = vxor.u32 %v1162, 2147483648
    %v1165 = vmul.f32 %v1163, 1.442695
    %v1166 = vpow.pop %v1165
    %v1167 = vmul.f32 %v1164, 1.442695
    %v1168 = vpow.pop %v1167
    %v1169 = vadd.f32 %v1166, 1.0
    %v1170 = vadd.f32 %v1168, 1.0
    %v1171 = vrcp.pop %v1169
    %v1172 = vmul.f32 1.0, %v1171
    %v1173 = vrcp.pop %v1170
    %v1174 = vmul.f32 1.0, %v1173
    %v1175 = vmul.f32 %v234, %v1172
    %v1176 = vmul.f32 %v235, %v1174
    %v1177 = vxor.u32 %v1175, 2147483648
    %v1178 = vxor.u32 %v1176, 2147483648
    %v1179 = vmul.f32 %v1177, 1.442695
    %v1180 = vpow.pop %v1179
    %v1181 = vmul.f32 %v1178, 1.442695
    %v1182 = vpow.pop %v1181
    %v1183 = vadd.f32 %v1180, 1.0
    %v1184 = vadd.f32 %v1182, 1.0
    %v1185 = vrcp.pop %v1183
    %v1186 = vmul.f32 1.0, %v1185
    %v1187 = vrcp.pop %v1184
    %v1188 = vmul.f32 1.0, %v1187
    %v1189 = vmul.f32 %v1175, %v1186
    %v1190 = vmul.f32 %v1176, %v1188
    %v1191 = vmax.f32 %v1189, 0.0
    %v1192 = vmax.f32 %v1190, 0.0
    %v1193 = vmul.f32 %v1191, 0.5
    %v1194 = vmul.f32 %v1192, 0.5
    %v1195 = vadd.f32 %v234, %v1193
    %v1196 = vadd.f32 %v235, %v1194
    %v1197 = vmul.f32 %v1149, %v1149
    %v1198 = vmul.f32 %v1150, %v1150
    %v1199 = vsel %vm152, %v1197, 0.0
    %1200 = vadd.xlane.f32.xlu0 %v1199
    %v1201 = vpop.xlane.xlu0 %1200
    %v1202 = vsel %vm152, %v1198, 0.0
    %1203 = vadd.xlane.f32.xlu0 %v1202
    %v1204 = vpop.xlane.xlu0 %1203
    %v1205 = vrsqrt.pop %v1201
    %v1206 = vmul.f32 %v1201, %v1205
    %vm1207 = vcmp.eq.f32.partialorder %v1201, inf
    %v1208 = vsel %vm1207, %v1201, %v1206
    %vm1209 = vcmp.eq.f32.partialorder %v1201, 0.0
    %v1210 = vand.u32 %v1201, 2147483648
    %v1211 = vsel %vm1209, %v1210, %v1208
    %v1212 = vrsqrt.pop %v1204
    %v1213 = vmul.f32 %v1204, %v1212
    %vm1214 = vcmp.eq.f32.partialorder %v1204, inf
    %v1215 = vsel %vm1214, %v1204, %v1213
    %vm1216 = vcmp.eq.f32.partialorder %v1204, 0.0
    %v1217 = vand.u32 %v1204, 2147483648
    %v1218 = vsel %vm1216, %v1217, %v1215
    %v1219 = vmax.f32 %v1211, 1e-15
    %v1220 = vmax.f32 %v1218, 1e-15
    %v1221 = vmax.f32 %v1219, -0.9999999
    %v1222 = vmax.f32 %v1220, -0.9999999
    %v1223 = vmin.f32 %v1221, 0.9999999
    %v1224 = vmin.f32 %v1222, 0.9999999
    %v1225 = vadd.f32 %v1223, 1.0
    %v1226 = vlog2.pop %v1225
    %v1227 = vmul.f32 %v1226, 0.6931472
    %v1228 = vmul.f32 -0.5, %v1223
    %v1229 = vadd.f32 %v1228, 1.0
    %v1230 = vmul.f32 %v1229, %v1223
    %v1231 = vand.u32 2147483647, %v1223
    %vm1232 = vcmp.lt.f32.partialorder %v1231, 0.0004427343
    %v1233 = vsel %vm1232, %v1230, %v1227
    %v1234 = vadd.f32 %v1224, 1.0
    %v1235 = vlog2.pop %v1234
    %v1236 = vmul.f32 %v1235, 0.6931472
    %v1237 = vmul.f32 -0.5, %v1224
    %v1238 = vadd.f32 %v1237, 1.0
    %v1239 = vmul.f32 %v1238, %v1224
    %v1240 = vand.u32 2147483647, %v1224
    %vm1241 = vcmp.lt.f32.partialorder %v1240, 0.0004427343
    %v1242 = vsel %vm1241, %v1239, %v1236
    %v1243 = vsub.f32 0.0, %v1223
    %v1244 = vsub.f32 0.0, %v1224
    %v1245 = vadd.f32 %v1243, 1.0
    %v1246 = vlog2.pop %v1245
    %v1247 = vmul.f32 %v1246, 0.6931472
    %v1248 = vmul.f32 -0.5, %v1243
    %v1249 = vadd.f32 %v1248, 1.0
    %v1250 = vmul.f32 %v1249, %v1243
    %v1251 = vand.u32 2147483647, %v1243
    %vm1252 = vcmp.lt.f32.partialorder %v1251, 0.0004427343
    %v1253 = vsel %vm1252, %v1250, %v1247
    %v1254 = vadd.f32 %v1244, 1.0
    %v1255 = vlog2.pop %v1254
    %v1256 = vmul.f32 %v1255, 0.6931472
    %v1257 = vmul.f32 -0.5, %v1244
    %v1258 = vadd.f32 %v1257, 1.0
    %v1259 = vmul.f32 %v1258, %v1244
    %v1260 = vand.u32 2147483647, %v1244
    %vm1261 = vcmp.lt.f32.partialorder %v1260, 0.0004427343
    %v1262 = vsel %vm1261, %v1259, %v1256
    %v1263 = vsub.f32 %v1233, %v1253
    %v1264 = vsub.f32 %v1242, %v1262
    %v1265 = vmul.f32 %v1263, 0.5
    %v1266 = vmul.f32 %v1264, 0.5
    %v1267 = vmul.f32 %v1265, %v1149
    %v1268 = vmul.f32 %v1266, %v1150
    %v1269 = vrcp.pop %v1219
    %v1270 = vmul.f32 %v1267, %v1269
    %v1271 = vrcp.pop %v1220
    %v1272 = vmul.f32 %v1268, %v1271
    %v1273 = vsub.f32 %v1270, %v425
    %v1274 = vsub.f32 %v1272, %v426
    %v1275 = vmul.f32 %v1273, %v1273
    %v1276 = vmul.f32 %v1274, %v1274
    %v1277 = vsel %vm152, %v1275, 0.0
    %1278 = vadd.xlane.f32.xlu0 %v1277
    %v1279 = vpop.xlane.xlu0 %1278
    %v1280 = vsel %vm152, %v1276, 0.0
    %1281 = vadd.xlane.f32.xlu0 %v1280
    %v1282 = vpop.xlane.xlu0 %1281
    %v1283 = vmul.f32 %v1279, %v1270
    %v1284 = vmul.f32 %v1282, %v1272
    %v1285 = vxor.u32 %v1283, 2147483648
    %v1286 = vxor.u32 %v1284, 2147483648
    %v1287 = vmul.f32 %v1285, 1.442695
    %v1288 = vpow.pop %v1287
    %v1289 = vmul.f32 %v1286, 1.442695
    %v1290 = vpow.pop %v1289
    %v1291 = vadd.f32 %v1288, 1.0
    %v1292 = vadd.f32 %v1290, 1.0
    %v1293 = vrcp.pop %v1291
    %v1294 = vmul.f32 1.0, %v1293
    %v1295 = vrcp.pop %v1292
    %v1296 = vmul.f32 1.0, %v1295
    %v1297 = vmul.f32 %v425, %v1294
    %v1298 = vmul.f32 %v426, %v1296
    %v1299 = vxor.u32 %v1297, 2147483648
    %v1300 = vxor.u32 %v1298, 2147483648
    %v1301 = vmul.f32 %v1299, 1.442695
    %v1302 = vpow.pop %v1301
    %v1303 = vmul.f32 %v1300, 1.442695
    %v1304 = vpow.pop %v1303
    %v1305 = vadd.f32 %v1302, 1.0
    %v1306 = vadd.f32 %v1304, 1.0
    %v1307 = vrcp.pop %v1305
    %v1308 = vmul.f32 1.0, %v1307
    %v1309 = vrcp.pop %v1306
    %v1310 = vmul.f32 1.0, %v1309
    %v1311 = vmul.f32 %v1297, %v1308
    %v1312 = vmul.f32 %v1298, %v1310
    %v1313 = vmax.f32 %v1311, 0.0
    %v1314 = vmax.f32 %v1312, 0.0
    %v1315 = vmul.f32 %v1313, 0.5
    %v1316 = vmul.f32 %v1314, 0.5
    %v1317 = vadd.f32 %v425, %v1315
    %v1318 = vadd.f32 %v426, %v1316
    %v1319 = vmul.f32 %v1195, %v1195
    %v1320 = vmul.f32 %v1196, %v1196
    %v1321 = vsel %vm63, %v1319, 0.0
    %1322 = vadd.xlane.f32.xlu0 %v1321
    %v1323 = vpop.xlane.xlu0 %1322
    %v1324 = vsel %vm63, %v1320, 0.0
    %1325 = vadd.xlane.f32.xlu0 %v1324
    %v1326 = vpop.xlane.xlu0 %1325
    %v1327 = vrsqrt.pop %v1323
    %v1328 = vmul.f32 %v1323, %v1327
    %vm1329 = vcmp.eq.f32.partialorder %v1323, inf
    %v1330 = vsel %vm1329, %v1323, %v1328
    %vm1331 = vcmp.eq.f32.partialorder %v1323, 0.0
    %v1332 = vand.u32 %v1323, 2147483648
    %v1333 = vsel %vm1331, %v1332, %v1330
    %v1334 = vrsqrt.pop %v1326
    %v1335 = vmul.f32 %v1326, %v1334
    %vm1336 = vcmp.eq.f32.partialorder %v1326, inf
    %v1337 = vsel %vm1336, %v1326, %v1335
    %vm1338 = vcmp.eq.f32.partialorder %v1326, 0.0
    %v1339 = vand.u32 %v1326, 2147483648
    %v1340 = vsel %vm1338, %v1339, %v1337
    %v1341 = vmax.f32 %v1333, 1e-15
    %v1342 = vmax.f32 %v1340, 1e-15
    %v1343 = vmax.f32 %v1341, 1e-12
    %v1344 = vmax.f32 %v1342, 1e-12
    %v1345 = vrcp.pop %v1343
    %v1346 = vmul.f32 %v1195, %v1345
    %v1347 = vrcp.pop %v1344
    %v1348 = vmul.f32 %v1196, %v1347
    %v1349 = vmul.f32 %v1172, %v1172
    %v1350 = vmul.f32 %v1174, %v1174
    %v1351 = vsel %vm63, %v1349, 0.0
    %1352 = vadd.xlane.f32.xlu0 %v1351
    %v1353 = vpop.xlane.xlu0 %1352
    %v1354 = vsel %vm63, %v1350, 0.0
    %1355 = vadd.xlane.f32.xlu0 %v1354
    %v1356 = vpop.xlane.xlu0 %1355
    %v1357 = vrsqrt.pop %v1353
    %v1358 = vmul.f32 %v1353, %v1357
    %vm1359 = vcmp.eq.f32.partialorder %v1353, inf
    %v1360 = vsel %vm1359, %v1353, %v1358
    %vm1361 = vcmp.eq.f32.partialorder %v1353, 0.0
    %v1362 = vand.u32 %v1353, 2147483648
    %v1363 = vsel %vm1361, %v1362, %v1360
    %v1364 = vrsqrt.pop %v1356
    %v1365 = vmul.f32 %v1356, %v1364
    %vm1366 = vcmp.eq.f32.partialorder %v1356, inf
    %v1367 = vsel %vm1366, %v1356, %v1365
    %vm1368 = vcmp.eq.f32.partialorder %v1356, 0.0
    %v1369 = vand.u32 %v1356, 2147483648
    %v1370 = vsel %vm1368, %v1369, %v1367
    %v1371 = vmax.f32 %v1363, 1e-15
    %v1372 = vmax.f32 %v1370, 1e-15
    %v1373 = vmax.f32 %v1371, 1e-12
    %v1374 = vmax.f32 %v1372, 1e-12
    %v1375 = vrcp.pop %v1373
    %v1376 = vmul.f32 %v1172, %v1375
    %v1377 = vrcp.pop %v1374
    %v1378 = vmul.f32 %v1174, %v1377
    %v1380 = vsel %vm63, %v1346, 0
    %v1383 = vsel %vm63, %v1348, 0
    %v1386 = vsel %vm63, %v1376, 0
    %v1389 = vsel %vm63, %v1378, 0
    %1391 = vmatprep.subr.mxu0 0.0
    %1392 = vmatpush1.xpose.msra.mxu0 0.0
    %1393 = vmatprep.subr.mxu0 0.0
    %1394 = vmatpush1.xpose.msra.mxu0 0.0
    %1395 = vmatprep.subr.mxu0 0.0
    %1396 = vmatpush1.xpose.msra.mxu0 0.0
    %1397 = vmatprep.subr.mxu0 0.0
    %1398 = vmatpush1.xpose.msra.mxu0 0.0
    %1399 = vmatprep.subr.mxu0 0.0
    %1400 = vmatpush1.xpose.msra.mxu0 0.0
    %1401 = vmatprep.subr.mxu0 0.0
    %1402 = vmatpush1.xpose.msra.mxu0 0.0
    %1403 = vmatprep.subr.mxu0 0.0
    %1404 = vmatpush1.xpose.msra.mxu0 0.0
    %1405 = vmatprep.subr.mxu0 0.0
    %1406 = vmatpush1.xpose.msra.mxu0 0.0
    %1407 = vmatprep.subr.mxu0 0.0
    %1408 = vmatpush1.xpose.msra.mxu0 0.0
    %1409 = vmatprep.subr.mxu0 0.0
    %1410 = vmatpush1.xpose.msra.mxu0 0.0
    %1411 = vmatprep.subr.mxu0 0.0
    %1412 = vmatpush1.xpose.msra.mxu0 0.0
    %1413 = vmatprep.subr.mxu0 0.0
    %1414 = vmatpush1.xpose.msra.mxu0 0.0
    %1415 = vmatprep.subr.mxu0 0.0
    %1416 = vmatpush1.xpose.msra.mxu0 0.0
    %1417 = vmatprep.subr.mxu0 0.0
    %1418 = vmatpush1.xpose.msra.mxu0 0.0
    %1419 = vmatprep.subr.mxu0 0.0
    %1420 = vmatpush1.xpose.msra.mxu0 %v1389
    %1421 = vmatprep.subr.mxu0 0.0
    %1422 = vmatpush1.xpose.msra.mxu0 %v1386
    %1423 = vmatprep.subr.mxu0 0.0
    %1424 = vmatpush2.xpose.msra.mxu0 0.0
    %1425 = vmatprep.subr.mxu0 0.0
    %1426 = vmatpush2.xpose.msra.mxu0 0.0
    %1427 = vmatprep.subr.mxu0 0.0
    %1428 = vmatpush2.xpose.msra.mxu0 0.0
    %1429 = vmatprep.subr.mxu0 0.0
    %1430 = vmatpush2.xpose.msra.mxu0 0.0
    %1431 = vmatprep.subr.mxu0 0.0
    %1432 = vmatpush2.xpose.msra.mxu0 0.0
    %1433 = vmatprep.subr.mxu0 0.0
    %1434 = vmatpush2.xpose.msra.mxu0 0.0
    %1435 = vmatprep.subr.mxu0 0.0
    %1436 = vmatpush2.xpose.msra.mxu0 0.0
    %1437 = vmatprep.subr.mxu0 0.0
    %1438 = vmatpush2.xpose.msra.mxu0 0.0
    %1439 = vmatprep.subr.mxu0 0.0
    %1440 = vmatpush2.xpose.msra.mxu0 0.0
    %1441 = vmatprep.subr.mxu0 0.0
    %1442 = vmatpush2.xpose.msra.mxu0 0.0
    %1443 = vmatprep.subr.mxu0 0.0
    %1444 = vmatpush2.xpose.msra.mxu0 0.0
    %1445 = vmatprep.subr.mxu0 0.0
    %1446 = vmatpush2.xpose.msra.mxu0 0.0
    %1447 = vmatprep.subr.mxu0 0.0
    %1448 = vmatpush2.xpose.msra.mxu0 0.0
    %1449 = vmatprep.subr.mxu0 0.0
    %1450 = vmatpush2.xpose.msra.mxu0 0.0
    %1451 = vmatprep.subr.mxu0 0.0
    %1452 = vmatpush2.xpose.msra.mxu0 0.0
    %1453 = vmatprep.subr.mxu0 0.0
    %1454 = vmatpush2.xpose.msra.mxu0 0.0
    %1455 = vmatprep.mubr.f32.mxu0 0.0
    %1456 = vmatmul.mubr.f32.gmra.mxu0 %v1380
    %v1457 = vpop.f32.mrf.mxu0
    %v1458 = vadd.f32 0.0, %v1457
    %v1459 = vpop.f32.mrf.mxu0
    %1460 = vmatprep.mubr.f32.mxu0 0.0
    %1461 = vmatmul.mubr.f32.gmra.mxu0 %v1383
    %v1462 = vpop.f32.mrf.mxu0
    %v1463 = vadd.f32 0.0, %v1462
    %v1464 = vpop.f32.mrf.mxu0
    %1465 = vdwg.mxu0
    %v1466 = vrcp.pop 0.5
    %v1467 = vmul.f32 %v1458, %v1466
    %v1468 = vmul.f32 %v1463, %v1466
    %v1469 = vmul.f32 %v1467, 1.442695
    %v1470 = vpow.pop %v1469
    %v1471 = vmul.f32 %v1468, 1.442695
    %v1472 = vpow.pop %v1471
    %1473 = vmatprep.subr.mxu0 0.0
    %1474 = vmatpush1.xpose.msra.mxu0 0.0
    %1475 = vmatprep.subr.mxu0 0.0
    %1476 = vmatpush1.xpose.msra.mxu0 0.0
    %1477 = vmatprep.subr.mxu0 0.0
    %1478 = vmatpush1.xpose.msra.mxu0 0.0
    %1479 = vmatprep.subr.mxu0 0.0
    %1480 = vmatpush1.xpose.msra.mxu0 0.0
    %1481 = vmatprep.subr.mxu0 0.0
    %1482 = vmatpush1.xpose.msra.mxu0 0.0
    %1483 = vmatprep.subr.mxu0 0.0
    %1484 = vmatpush1.xpose.msra.mxu0 0.0
    %1485 = vmatprep.subr.mxu0 0.0
    %1486 = vmatpush1.xpose.msra.mxu0 0.0
    %1487 = vmatprep.subr.mxu0 0.0
    %1488 = vmatpush1.xpose.msra.mxu0 0.0
    %1489 = vmatprep.subr.mxu0 0.0
    %1490 = vmatpush1.xpose.msra.mxu0 0.0
    %1491 = vmatprep.subr.mxu0 0.0
    %1492 = vmatpush1.xpose.msra.mxu0 0.0
    %1493 = vmatprep.subr.mxu0 0.0
    %1494 = vmatpush1.xpose.msra.mxu0 0.0
    %1495 = vmatprep.subr.mxu0 0.0
    %1496 = vmatpush1.xpose.msra.mxu0 0.0
    %1497 = vmatprep.subr.mxu0 0.0
    %1498 = vmatpush1.xpose.msra.mxu0 0.0
    %1499 = vmatprep.subr.mxu0 0.0
    %1500 = vmatpush1.xpose.msra.mxu0 0.0
    %1501 = vmatprep.subr.mxu0 0.0
    %1502 = vmatpush1.xpose.msra.mxu0 %v1383
    %1503 = vmatprep.subr.mxu0 0.0
    %1504 = vmatpush1.xpose.msra.mxu0 %v1380
    %1505 = vmatprep.subr.mxu0 0.0
    %1506 = vmatpush2.xpose.msra.mxu0 0.0
    %1507 = vmatprep.subr.mxu0 0.0
    %1508 = vmatpush2.xpose.msra.mxu0 0.0
    %1509 = vmatprep.subr.mxu0 0.0
    %1510 = vmatpush2.xpose.msra.mxu0 0.0
    %1511 = vmatprep.subr.mxu0 0.0
    %1512 = vmatpush2.xpose.msra.mxu0 0.0
    %1513 = vmatprep.subr.mxu0 0.0
    %1514 = vmatpush2.xpose.msra.mxu0 0.0
    %1515 = vmatprep.subr.mxu0 0.0
    %1516 = vmatpush2.xpose.msra.mxu0 0.0
    %1517 = vmatprep.subr.mxu0 0.0
    %1518 = vmatpush2.xpose.msra.mxu0 0.0
    %1519 = vmatprep.subr.mxu0 0.0
    %1520 = vmatpush2.xpose.msra.mxu0 0.0
    %1521 = vmatprep.subr.mxu0 0.0
    %1522 = vmatpush2.xpose.msra.mxu0 0.0
    %1523 = vmatprep.subr.mxu0 0.0
    %1524 = vmatpush2.xpose.msra.mxu0 0.0
    %1525 = vmatprep.subr.mxu0 0.0
    %1526 = vmatpush2.xpose.msra.mxu0 0.0
    %1527 = vmatprep.subr.mxu0 0.0
    %1528 = vmatpush2.xpose.msra.mxu0 0.0
    %1529 = vmatprep.subr.mxu0 0.0
    %1530 = vmatpush2.xpose.msra.mxu0 0.0
    %1531 = vmatprep.subr.mxu0 0.0
    %1532 = vmatpush2.xpose.msra.mxu0 0.0
    %1533 = vmatprep.subr.mxu0 0.0
    %1534 = vmatpush2.xpose.msra.mxu0 0.0
    %1535 = vmatprep.subr.mxu0 0.0
    %1536 = vmatpush2.xpose.msra.mxu0 0.0
    %1537 = vmatprep.mubr.f32.mxu0 0.0
    %1538 = vmatmul.mubr.f32.gmra.mxu0 %v1380
    %v1539 = vpop.f32.mrf.mxu0
    %v1540 = vadd.f32 0.0, %v1539
    %v1541 = vpop.f32.mrf.mxu0
    %1542 = vmatprep.mubr.f32.mxu0 0.0
    %1543 = vmatmul.mubr.f32.gmra.mxu0 %v1383
    %v1544 = vpop.f32.mrf.mxu0
    %v1545 = vadd.f32 0.0, %v1544
    %v1546 = vpop.f32.mrf.mxu0
    %1547 = vdwg.mxu0
    %v1548 = vmul.f32 %v1540, %v1466
    %v1549 = vmul.f32 %v1545, %v1466
    %v1550 = vmul.f32 %v1548, 1.442695
    %v1551 = vpow.pop %v1550
    %v1552 = vmul.f32 %v1549, 1.442695
    %v1553 = vpow.pop %v1552
    %1554 = vmatprep.subr.mxu0 0.0
    %1555 = vmatpush1.xpose.msra.mxu0 0.0
    %1556 = vmatprep.subr.mxu0 0.0
    %1557 = vmatpush1.xpose.msra.mxu0 0.0
    %1558 = vmatprep.subr.mxu0 0.0
    %1559 = vmatpush1.xpose.msra.mxu0 0.0
    %1560 = vmatprep.subr.mxu0 0.0
    %1561 = vmatpush1.xpose.msra.mxu0 0.0
    %1562 = vmatprep.subr.mxu0 0.0
    %1563 = vmatpush1.xpose.msra.mxu0 0.0
    %1564 = vmatprep.subr.mxu0 0.0
    %1565 = vmatpush1.xpose.msra.mxu0 0.0
    %1566 = vmatprep.subr.mxu0 0.0
    %1567 = vmatpush1.xpose.msra.mxu0 0.0
    %1568 = vmatprep.subr.mxu0 0.0
    %1569 = vmatpush1.xpose.msra.mxu0 0.0
    %1570 = vmatprep.subr.mxu0 0.0
    %1571 = vmatpush1.xpose.msra.mxu0 0.0
    %1572 = vmatprep.subr.mxu0 0.0
    %1573 = vmatpush1.xpose.msra.mxu0 0.0
    %1574 = vmatprep.subr.mxu0 0.0
    %1575 = vmatpush1.xpose.msra.mxu0 0.0
    %1576 = vmatprep.subr.mxu0 0.0
    %1577 = vmatpush1.xpose.msra.mxu0 0.0
    %1578 = vmatprep.subr.mxu0 0.0
    %1579 = vmatpush1.xpose.msra.mxu0 0.0
    %1580 = vmatprep.subr.mxu0 0.0
    %1581 = vmatpush1.xpose.msra.mxu0 0.0
    %1582 = vmatprep.subr.mxu0 0.0
    %1583 = vmatpush1.xpose.msra.mxu0 %v1389
    %1584 = vmatprep.subr.mxu0 0.0
    %1585 = vmatpush1.xpose.msra.mxu0 %v1386
    %1586 = vmatprep.subr.mxu0 0.0
    %1587 = vmatpush2.xpose.msra.mxu0 0.0
    %1588 = vmatprep.subr.mxu0 0.0
    %1589 = vmatpush2.xpose.msra.mxu0 0.0
    %1590 = vmatprep.subr.mxu0 0.0
    %1591 = vmatpush2.xpose.msra.mxu0 0.0
    %1592 = vmatprep.subr.mxu0 0.0
    %1593 = vmatpush2.xpose.msra.mxu0 0.0
    %1594 = vmatprep.subr.mxu0 0.0
    %1595 = vmatpush2.xpose.msra.mxu0 0.0
    %1596 = vmatprep.subr.mxu0 0.0
    %1597 = vmatpush2.xpose.msra.mxu0 0.0
    %1598 = vmatprep.subr.mxu0 0.0
    %1599 = vmatpush2.xpose.msra.mxu0 0.0
    %1600 = vmatprep.subr.mxu0 0.0
    %1601 = vmatpush2.xpose.msra.mxu0 0.0
    %1602 = vmatprep.subr.mxu0 0.0
    %1603 = vmatpush2.xpose.msra.mxu0 0.0
    %1604 = vmatprep.subr.mxu0 0.0
    %1605 = vmatpush2.xpose.msra.mxu0 0.0
    %1606 = vmatprep.subr.mxu0 0.0
    %1607 = vmatpush2.xpose.msra.mxu0 0.0
    %1608 = vmatprep.subr.mxu0 0.0
    %1609 = vmatpush2.xpose.msra.mxu0 0.0
    %1610 = vmatprep.subr.mxu0 0.0
    %1611 = vmatpush2.xpose.msra.mxu0 0.0
    %1612 = vmatprep.subr.mxu0 0.0
    %1613 = vmatpush2.xpose.msra.mxu0 0.0
    %1614 = vmatprep.subr.mxu0 0.0
    %1615 = vmatpush2.xpose.msra.mxu0 0.0
    %1616 = vmatprep.subr.mxu0 0.0
    %1617 = vmatpush2.xpose.msra.mxu0 0.0
    %1618 = vmatprep.mubr.f32.mxu0 0.0
    %1619 = vmatmul.mubr.f32.gmra.mxu0 %v1386
    %v1620 = vpop.f32.mrf.mxu0
    %v1621 = vadd.f32 0.0, %v1620
    %v1622 = vpop.f32.mrf.mxu0
    %1623 = vmatprep.mubr.f32.mxu0 0.0
    %1624 = vmatmul.mubr.f32.gmra.mxu0 %v1389
    %v1625 = vpop.f32.mrf.mxu0
    %v1626 = vadd.f32 0.0, %v1625
    %v1627 = vpop.f32.mrf.mxu0
    %1628 = vdwg.mxu0
    %v1629 = vmul.f32 %v1621, %v1466
    %v1630 = vmul.f32 %v1626, %v1466
    %v1631 = vmul.f32 %v1629, 1.442695
    %v1632 = vpow.pop %v1631
    %v1633 = vmul.f32 %v1630, 1.442695
    %v1634 = vpow.pop %v1633
    %vm1635 = vcmp.gt.f32.partialorder %v1470, 0.5
    %vm1636 = vcmp.gt.f32.partialorder %v1472, 0.5
    %v1637 = vsel %vm1635, %v1470, 0.0
    %v1638 = vsel %vm1636, %v1472, 0.0
    %v1639 = vsel %vm152, %v1637, 0.0
    %1640 = vadd.xlane.f32.xlu0 %v1639
    %v1641 = vpop.xlane.xlu0 %1640
    %v1642 = vsel %vm152, %v1638, 0.0
    %1643 = vadd.xlane.f32.xlu0 %v1642
    %v1644 = vpop.xlane.xlu0 %1643
    %vm1645 = vcmp.gt.f32.partialorder %v1551, 0.5
    %vm1646 = vcmp.gt.f32.partialorder %v1553, 0.5
    %v1647 = vsel %vm1645, %v1551, 0.0
    %v1648 = vsel %vm1646, %v1553, 0.0
    %v1649 = vsel %vm152, %v1647, 0.0
    %1650 = vadd.xlane.f32.xlu0 %v1649
    %v1651 = vpop.xlane.xlu0 %1650
    %v1652 = vsel %vm152, %v1648, 0.0
    %1653 = vadd.xlane.f32.xlu0 %v1652
    %v1654 = vpop.xlane.xlu0 %1653
    %v1655 = vadd.f32 %v1641, %v1651
    %v1656 = vadd.f32 %v1644, %v1654
    %vm1657 = vcmp.gt.f32.partialorder %v1632, 0.5
    %vm1658 = vcmp.gt.f32.partialorder %v1634, 0.5
    %v1659 = vsel %vm1657, %v1632, 0.0
    %v1660 = vsel %vm1658, %v1634, 0.0
    %v1661 = vsel %vm152, %v1659, 0.0
    %1662 = vadd.xlane.f32.xlu0 %v1661
    %v1663 = vpop.xlane.xlu0 %1662
    %v1664 = vsel %vm152, %v1660, 0.0
    %1665 = vadd.xlane.f32.xlu0 %v1664
    %v1666 = vpop.xlane.xlu0 %1665
    %v1667 = vadd.f32 %v1655, %v1663
    %v1668 = vadd.f32 %v1656, %v1666
    %vm1669 = vcmp.lt.f32.partialorder %v1470, 0.5
    %vm1670 = vcmp.lt.f32.partialorder %v1472, 0.5
    %v1671 = vsel %vm1669, %v1470, 0.0
    %v1672 = vsel %vm1670, %v1472, 0.0
    %v1673 = vsel %vm152, %v1671, 0.0
    %1674 = vadd.xlane.f32.xlu0 %v1673
    %v1675 = vpop.xlane.xlu0 %1674
    %v1676 = vsel %vm152, %v1672, 0.0
    %1677 = vadd.xlane.f32.xlu0 %v1676
    %v1678 = vpop.xlane.xlu0 %1677
    %v1679 = vadd.f32 %v1667, %v1675
    %v1680 = vadd.f32 %v1668, %v1678
    %vm1681 = vcmp.lt.f32.partialorder %v1551, 0.5
    %vm1682 = vcmp.lt.f32.partialorder %v1553, 0.5
    %v1683 = vsel %vm1681, %v1551, 0.0
    %v1684 = vsel %vm1682, %v1553, 0.0
    %v1685 = vsel %vm152, %v1683, 0.0
    %1686 = vadd.xlane.f32.xlu0 %v1685
    %v1687 = vpop.xlane.xlu0 %1686
    %v1688 = vsel %vm152, %v1684, 0.0
    %1689 = vadd.xlane.f32.xlu0 %v1688
    %v1690 = vpop.xlane.xlu0 %1689
    %v1691 = vadd.f32 %v1679, %v1687
    %v1692 = vadd.f32 %v1680, %v1690
    %vm1693 = vcmp.lt.f32.partialorder %v1632, 0.5
    %vm1694 = vcmp.lt.f32.partialorder %v1634, 0.5
    %v1695 = vsel %vm1693, %v1632, 0.0
    %v1696 = vsel %vm1694, %v1634, 0.0
    %v1697 = vsel %vm152, %v1695, 0.0
    %1698 = vadd.xlane.f32.xlu0 %v1697
    %v1699 = vpop.xlane.xlu0 %1698
    %v1700 = vsel %vm152, %v1696, 0.0
    %1701 = vadd.xlane.f32.xlu0 %v1700
    %v1702 = vpop.xlane.xlu0 %1701
    %v1703 = vadd.f32 %v1691, %v1699
    %v1704 = vadd.f32 %v1692, %v1702
    %v1705 = vrcp.pop %v1703
    %v1706 = vmul.f32 %v1667, %v1705
    %v1707 = vrcp.pop %v1704
    %v1708 = vmul.f32 %v1668, %v1707
    %v1709 = vlog2.pop %v1706
    %v1710 = vmul.f32 %v1709, 0.6931472
    %v1711 = vlog2.pop %v1708
    %v1712 = vmul.f32 %v1711, 0.6931472
    %v1713 = vsub.f32 0.0, %v1710
    %v1714 = vsub.f32 0.0, %v1712
    %vm1715 = vcmask 7168
    %v1716 = vsel %vm1715, %v1713, 0.0
    %v1717 = vsel %vm1715, %v1714, 0.0
    %v1718 = vadd.f32 %v1716, %v1717
    %1719 = vadd.xlane.f32.xlu0 %v1718
    %v1720 = vpop.xlane.xlu0 %1719
    %v1721 = vrot.slane %v1720, 4
    %v1722 = vadd.f32 %v1720, %v1721
    %v1723 = vrot.slane %v1722, 2
    %v1724 = vadd.f32 %v1722, %v1723
    %v1725 = vrot.slane %v1724, 1
    %v1726 = vadd.f32 %v1724, %v1725
    %s1727 = vtos %v1726
    %v1728 = vrcp.pop 16.0
    %s1729 = vtos %v1728
    %s1730 = smul.f32 %s1727, %s1729
    %v1731 = vmul.f32 %v1317, %v1317
    %v1732 = vmul.f32 %v1318, %v1318
    %v1733 = vsel %vm152, %v1731, 0.0
    %1734 = vadd.xlane.f32.xlu0 %v1733
    %v1735 = vpop.xlane.xlu0 %1734
    %v1736 = vsel %vm152, %v1732, 0.0
    %1737 = vadd.xlane.f32.xlu0 %v1736
    %v1738 = vpop.xlane.xlu0 %1737
    %v1739 = vrsqrt.pop %v1735
    %v1740 = vmul.f32 %v1735, %v1739
    %vm1741 = vcmp.eq.f32.partialorder %v1735, inf
    %v1742 = vsel %vm1741, %v1735, %v1740
    %vm1743 = vcmp.eq.f32.partialorder %v1735, 0.0
    %v1744 = vand.u32 %v1735, 2147483648
    %v1745 = vsel %vm1743, %v1744, %v1742
    %v1746 = vrsqrt.pop %v1738
    %v1747 = vmul.f32 %v1738, %v1746
    %vm1748 = vcmp.eq.f32.partialorder %v1738, inf
    %v1749 = vsel %vm1748, %v1738, %v1747
    %vm1750 = vcmp.eq.f32.partialorder %v1738, 0.0
    %v1751 = vand.u32 %v1738, 2147483648
    %v1752 = vsel %vm1750, %v1751, %v1749
    %v1753 = vmax.f32 %v1745, 1e-15
    %v1754 = vmax.f32 %v1752, 1e-15
    %v1755 = vmax.f32 %v1753, 1e-12
    %v1756 = vmax.f32 %v1754, 1e-12
    %v1757 = vrcp.pop %v1755
    %v1758 = vmul.f32 %v1317, %v1757
    %v1759 = vrcp.pop %v1756
    %v1760 = vmul.f32 %v1318, %v1759
    %v1761 = vmul.f32 %v1294, %v1294
    %v1762 = vmul.f32 %v1296, %v1296
    %v1763 = vsel %vm152, %v1761, 0.0
    %1764 = vadd.xlane.f32.xlu0 %v1763
    %v1765 = vpop.xlane.xlu0 %1764
    %v1766 = vsel %vm152, %v1762, 0.0
    %1767 = vadd.xlane.f32.xlu0 %v1766
    %v1768 = vpop.xlane.xlu0 %1767
    %v1769 = vrsqrt.pop %v1765
    %v1770 = vmul.f32 %v1765, %v1769
    %vm1771 = vcmp.eq.f32.partialorder %v1765, inf
    %v1772 = vsel %vm1771, %v1765, %v1770
    %vm1773 = vcmp.eq.f32.partialorder %v1765, 0.0
    %v1774 = vand.u32 %v1765, 2147483648
    %v1775 = vsel %vm1773, %v1774, %v1772
    %v1776 = vrsqrt.pop %v1768
    %v1777 = vmul.f32 %v1768, %v1776
    %vm1778 = vcmp.eq.f32.partialorder %v1768, inf
    %v1779 = vsel %vm1778, %v1768, %v1777
    %vm1780 = vcmp.eq.f32.partialorder %v1768, 0.0
    %v1781 = vand.u32 %v1768, 2147483648
    %v1782 = vsel %vm1780, %v1781, %v1779
    %v1783 = vmax.f32 %v1775, 1e-15
    %v1784 = vmax.f32 %v1782, 1e-15
    %v1785 = vmax.f32 %v1783, 1e-12
    %v1786 = vmax.f32 %v1784, 1e-12
    %v1787 = vrcp.pop %v1785
    %v1788 = vmul.f32 %v1294, %v1787
    %v1789 = vrcp.pop %v1786
    %v1790 = vmul.f32 %v1296, %v1789
    %v1792 = vsel %vm152, %v1758, 0
    %v1795 = vsel %vm152, %v1760, 0
    %v1798 = vsel %vm152, %v1788, 0
    %v1801 = vsel %vm152, %v1790, 0
    %1803 = vmatprep.subr.mxu0 0.0
    %1804 = vmatpush1.xpose.msra.mxu0 0.0
    %1805 = vmatprep.subr.mxu0 0.0
    %1806 = vmatpush1.xpose.msra.mxu0 0.0
    %1807 = vmatprep.subr.mxu0 0.0
    %1808 = vmatpush1.xpose.msra.mxu0 0.0
    %1809 = vmatprep.subr.mxu0 0.0
    %1810 = vmatpush1.xpose.msra.mxu0 0.0
    %1811 = vmatprep.subr.mxu0 0.0
    %1812 = vmatpush1.xpose.msra.mxu0 0.0
    %1813 = vmatprep.subr.mxu0 0.0
    %1814 = vmatpush1.xpose.msra.mxu0 0.0
    %1815 = vmatprep.subr.mxu0 0.0
    %1816 = vmatpush1.xpose.msra.mxu0 0.0
    %1817 = vmatprep.subr.mxu0 0.0
    %1818 = vmatpush1.xpose.msra.mxu0 0.0
    %1819 = vmatprep.subr.mxu0 0.0
    %1820 = vmatpush1.xpose.msra.mxu0 0.0
    %1821 = vmatprep.subr.mxu0 0.0
    %1822 = vmatpush1.xpose.msra.mxu0 0.0
    %1823 = vmatprep.subr.mxu0 0.0
    %1824 = vmatpush1.xpose.msra.mxu0 0.0
    %1825 = vmatprep.subr.mxu0 0.0
    %1826 = vmatpush1.xpose.msra.mxu0 0.0
    %1827 = vmatprep.subr.mxu0 0.0
    %1828 = vmatpush1.xpose.msra.mxu0 0.0
    %1829 = vmatprep.subr.mxu0 0.0
    %1830 = vmatpush1.xpose.msra.mxu0 0.0
    %1831 = vmatprep.subr.mxu0 0.0
    %1832 = vmatpush1.xpose.msra.mxu0 %v1801
    %1833 = vmatprep.subr.mxu0 0.0
    %1834 = vmatpush1.xpose.msra.mxu0 %v1798
    %1835 = vmatprep.subr.mxu0 0.0
    %1836 = vmatpush2.xpose.msra.mxu0 0.0
    %1837 = vmatprep.subr.mxu0 0.0
    %1838 = vmatpush2.xpose.msra.mxu0 0.0
    %1839 = vmatprep.subr.mxu0 0.0
    %1840 = vmatpush2.xpose.msra.mxu0 0.0
    %1841 = vmatprep.subr.mxu0 0.0
    %1842 = vmatpush2.xpose.msra.mxu0 0.0
    %1843 = vmatprep.subr.mxu0 0.0
    %1844 = vmatpush2.xpose.msra.mxu0 0.0
    %1845 = vmatprep.subr.mxu0 0.0
    %1846 = vmatpush2.xpose.msra.mxu0 0.0
    %1847 = vmatprep.subr.mxu0 0.0
    %1848 = vmatpush2.xpose.msra.mxu0 0.0
    %1849 = vmatprep.subr.mxu0 0.0
    %1850 = vmatpush2.xpose.msra.mxu0 0.0
    %1851 = vmatprep.subr.mxu0 0.0
    %1852 = vmatpush2.xpose.msra.mxu0 0.0
    %1853 = vmatprep.subr.mxu0 0.0
    %1854 = vmatpush2.xpose.msra.mxu0 0.0
    %1855 = vmatprep.subr.mxu0 0.0
    %1856 = vmatpush2.xpose.msra.mxu0 0.0
    %1857 = vmatprep.subr.mxu0 0.0
    %1858 = vmatpush2.xpose.msra.mxu0 0.0
    %1859 = vmatprep.subr.mxu0 0.0
    %1860 = vmatpush2.xpose.msra.mxu0 0.0
    %1861 = vmatprep.subr.mxu0 0.0
    %1862 = vmatpush2.xpose.msra.mxu0 0.0
    %1863 = vmatprep.subr.mxu0 0.0
    %1864 = vmatpush2.xpose.msra.mxu0 0.0
    %1865 = vmatprep.subr.mxu0 0.0
    %1866 = vmatpush2.xpose.msra.mxu0 0.0
    %1867 = vmatprep.mubr.f32.mxu0 0.0
    %1868 = vmatmul.mubr.f32.gmra.mxu0 %v1792
    %v1869 = vpop.f32.mrf.mxu0
    %v1870 = vadd.f32 0.0, %v1869
    %v1871 = vpop.f32.mrf.mxu0
    %1872 = vmatprep.mubr.f32.mxu0 0.0
    %1873 = vmatmul.mubr.f32.gmra.mxu0 %v1795
    %v1874 = vpop.f32.mrf.mxu0
    %v1875 = vadd.f32 0.0, %v1874
    %v1876 = vpop.f32.mrf.mxu0
    %1877 = vdwg.mxu0
    %v1878 = vmul.f32 %v1870, %v1466
    %v1879 = vmul.f32 %v1875, %v1466
    %v1880 = vmul.f32 %v1878, 1.442695
    %v1881 = vpow.pop %v1880
    %v1882 = vmul.f32 %v1879, 1.442695
    %v1883 = vpow.pop %v1882
    %1884 = vmatprep.subr.mxu0 0.0
    %1885 = vmatpush1.xpose.msra.mxu0 0.0
    %1886 = vmatprep.subr.mxu0 0.0
    %1887 = vmatpush1.xpose.msra.mxu0 0.0
    %1888 = vmatprep.subr.mxu0 0.0
    %1889 = vmatpush1.xpose.msra.mxu0 0.0
    %1890 = vmatprep.subr.mxu0 0.0
    %1891 = vmatpush1.xpose.msra.mxu0 0.0
    %1892 = vmatprep.subr.mxu0 0.0
    %1893 = vmatpush1.xpose.msra.mxu0 0.0
    %1894 = vmatprep.subr.mxu0 0.0
    %1895 = vmatpush1.xpose.msra.mxu0 0.0
    %1896 = vmatprep.subr.mxu0 0.0
    %1897 = vmatpush1.xpose.msra.mxu0 0.0
    %1898 = vmatprep.subr.mxu0 0.0
    %1899 = vmatpush1.xpose.msra.mxu0 0.0
    %1900 = vmatprep.subr.mxu0 0.0
    %1901 = vmatpush1.xpose.msra.mxu0 0.0
    %1902 = vmatprep.subr.mxu0 0.0
    %1903 = vmatpush1.xpose.msra.mxu0 0.0
    %1904 = vmatprep.subr.mxu0 0.0
    %1905 = vmatpush1.xpose.msra.mxu0 0.0
    %1906 = vmatprep.subr.mxu0 0.0
    %1907 = vmatpush1.xpose.msra.mxu0 0.0
    %1908 = vmatprep.subr.mxu0 0.0
    %1909 = vmatpush1.xpose.msra.mxu0 0.0
    %1910 = vmatprep.subr.mxu0 0.0
    %1911 = vmatpush1.xpose.msra.mxu0 0.0
    %1912 = vmatprep.subr.mxu0 0.0
    %1913 = vmatpush1.xpose.msra.mxu0 %v1795
    %1914 = vmatprep.subr.mxu0 0.0
    %1915 = vmatpush1.xpose.msra.mxu0 %v1792
    %1916 = vmatprep.subr.mxu0 0.0
    %1917 = vmatpush2.xpose.msra.mxu0 0.0
    %1918 = vmatprep.subr.mxu0 0.0
    %1919 = vmatpush2.xpose.msra.mxu0 0.0
    %1920 = vmatprep.subr.mxu0 0.0
    %1921 = vmatpush2.xpose.msra.mxu0 0.0
    %1922 = vmatprep.subr.mxu0 0.0
    %1923 = vmatpush2.xpose.msra.mxu0 0.0
    %1924 = vmatprep.subr.mxu0 0.0
    %1925 = vmatpush2.xpose.msra.mxu0 0.0
    %1926 = vmatprep.subr.mxu0 0.0
    %1927 = vmatpush2.xpose.msra.mxu0 0.0
    %1928 = vmatprep.subr.mxu0 0.0
    %1929 = vmatpush2.xpose.msra.mxu0 0.0
    %1930 = vmatprep.subr.mxu0 0.0
    %1931 = vmatpush2.xpose.msra.mxu0 0.0
    %1932 = vmatprep.subr.mxu0 0.0
    %1933 = vmatpush2.xpose.msra.mxu0 0.0
    %1934 = vmatprep.subr.mxu0 0.0
    %1935 = vmatpush2.xpose.msra.mxu0 0.0
    %1936 = vmatprep.subr.mxu0 0.0
    %1937 = vmatpush2.xpose.msra.mxu0 0.0
    %1938 = vmatprep.subr.mxu0 0.0
    %1939 = vmatpush2.xpose.msra.mxu0 0.0
    %1940 = vmatprep.subr.mxu0 0.0
    %1941 = vmatpush2.xpose.msra.mxu0 0.0
    %1942 = vmatprep.subr.mxu0 0.0
    %1943 = vmatpush2.xpose.msra.mxu0 0.0
    %1944 = vmatprep.subr.mxu0 0.0
    %1945 = vmatpush2.xpose.msra.mxu0 0.0
    %1946 = vmatprep.subr.mxu0 0.0
    %1947 = vmatpush2.xpose.msra.mxu0 0.0
    %1948 = vmatprep.mubr.f32.mxu0 0.0
    %1949 = vmatmul.mubr.f32.gmra.mxu0 %v1792
    %v1950 = vpop.f32.mrf.mxu0
    %v1951 = vadd.f32 0.0, %v1950
    %v1952 = vpop.f32.mrf.mxu0
    %1953 = vmatprep.mubr.f32.mxu0 0.0
    %1954 = vmatmul.mubr.f32.gmra.mxu0 %v1795
    %v1955 = vpop.f32.mrf.mxu0
    %v1956 = vadd.f32 0.0, %v1955
    %v1957 = vpop.f32.mrf.mxu0
    %1958 = vdwg.mxu0
    %v1959 = vmul.f32 %v1951, %v1466
    %v1960 = vmul.f32 %v1956, %v1466
    %v1961 = vmul.f32 %v1959, 1.442695
    %v1962 = vpow.pop %v1961
    %v1963 = vmul.f32 %v1960, 1.442695
    %v1964 = vpow.pop %v1963
    %1965 = vmatprep.subr.mxu0 0.0
    %1966 = vmatpush1.xpose.msra.mxu0 0.0
    %1967 = vmatprep.subr.mxu0 0.0
    %1968 = vmatpush1.xpose.msra.mxu0 0.0
    %1969 = vmatprep.subr.mxu0 0.0
    %1970 = vmatpush1.xpose.msra.mxu0 0.0
    %1971 = vmatprep.subr.mxu0 0.0
    %1972 = vmatpush1.xpose.msra.mxu0 0.0
    %1973 = vmatprep.subr.mxu0 0.0
    %1974 = vmatpush1.xpose.msra.mxu0 0.0
    %1975 = vmatprep.subr.mxu0 0.0
    %1976 = vmatpush1.xpose.msra.mxu0 0.0
    %1977 = vmatprep.subr.mxu0 0.0
    %1978 = vmatpush1.xpose.msra.mxu0 0.0
    %1979 = vmatprep.subr.mxu0 0.0
    %1980 = vmatpush1.xpose.msra.mxu0 0.0
    %1981 = vmatprep.subr.mxu0 0.0
    %1982 = vmatpush1.xpose.msra.mxu0 0.0
    %1983 = vmatprep.subr.mxu0 0.0
    %1984 = vmatpush1.xpose.msra.mxu0 0.0
    %1985 = vmatprep.subr.mxu0 0.0
    %1986 = vmatpush1.xpose.msra.mxu0 0.0
    %1987 = vmatprep.subr.mxu0 0.0
    %1988 = vmatpush1.xpose.msra.mxu0 0.0
    %1989 = vmatprep.subr.mxu0 0.0
    %1990 = vmatpush1.xpose.msra.mxu0 0.0
    %1991 = vmatprep.subr.mxu0 0.0
    %1992 = vmatpush1.xpose.msra.mxu0 0.0
    %1993 = vmatprep.subr.mxu0 0.0
    %1994 = vmatpush1.xpose.msra.mxu0 %v1801
    %1995 = vmatprep.subr.mxu0 0.0
    %1996 = vmatpush1.xpose.msra.mxu0 %v1798
    %1997 = vmatprep.subr.mxu0 0.0
    %1998 = vmatpush2.xpose.msra.mxu0 0.0
    %1999 = vmatprep.subr.mxu0 0.0
    %2000 = vmatpush2.xpose.msra.mxu0 0.0
    %2001 = vmatprep.subr.mxu0 0.0
    %2002 = vmatpush2.xpose.msra.mxu0 0.0
    %2003 = vmatprep.subr.mxu0 0.0
    %2004 = vmatpush2.xpose.msra.mxu0 0.0
    %2005 = vmatprep.subr.mxu0 0.0
    %2006 = vmatpush2.xpose.msra.mxu0 0.0
    %2007 = vmatprep.subr.mxu0 0.0
    %2008 = vmatpush2.xpose.msra.mxu0 0.0
    %2009 = vmatprep.subr.mxu0 0.0
    %2010 = vmatpush2.xpose.msra.mxu0 0.0
    %2011 = vmatprep.subr.mxu0 0.0
    %2012 = vmatpush2.xpose.msra.mxu0 0.0
    %2013 = vmatprep.subr.mxu0 0.0
    %2014 = vmatpush2.xpose.msra.mxu0 0.0
    %2015 = vmatprep.subr.mxu0 0.0
    %2016 = vmatpush2.xpose.msra.mxu0 0.0
    %2017 = vmatprep.subr.mxu0 0.0
    %2018 = vmatpush2.xpose.msra.mxu0 0.0
    %2019 = vmatprep.subr.mxu0 0.0
    %2020 = vmatpush2.xpose.msra.mxu0 0.0
    %2021 = vmatprep.subr.mxu0 0.0
    %2022 = vmatpush2.xpose.msra.mxu0 0.0
    %2023 = vmatprep.subr.mxu0 0.0
    %2024 = vmatpush2.xpose.msra.mxu0 0.0
    %2025 = vmatprep.subr.mxu0 0.0
    %2026 = vmatpush2.xpose.msra.mxu0 0.0
    %2027 = vmatprep.subr.mxu0 0.0
    %2028 = vmatpush2.xpose.msra.mxu0 0.0
    %2029 = vmatprep.mubr.f32.mxu0 0.0
    %2030 = vmatmul.mubr.f32.gmra.mxu0 %v1798
    %v2031 = vpop.f32.mrf.mxu0
    %v2032 = vadd.f32 0.0, %v2031
    %v2033 = vpop.f32.mrf.mxu0
    %2034 = vmatprep.mubr.f32.mxu0 0.0
    %2035 = vmatmul.mubr.f32.gmra.mxu0 %v1801
    %v2036 = vpop.f32.mrf.mxu0
    %v2037 = vadd.f32 0.0, %v2036
    %v2038 = vpop.f32.mrf.mxu0
    %2039 = vdwg.mxu0
    %v2040 = vmul.f32 %v2032, %v1466
    %v2041 = vmul.f32 %v2037, %v1466
    %v2042 = vmul.f32 %v2040, 1.442695
    %v2043 = vpow.pop %v2042
    %v2044 = vmul.f32 %v2041, 1.442695
    %v2045 = vpow.pop %v2044
    %vm2046 = vcmp.gt.f32.partialorder %v1881, 0.5
    %vm2047 = vcmp.gt.f32.partialorder %v1883, 0.5
    %v2048 = vsel %vm2046, %v1881, 0.0
    %v2049 = vsel %vm2047, %v1883, 0.0
    %v2050 = vsel %vm152, %v2048, 0.0
    %2051 = vadd.xlane.f32.xlu0 %v2050
    %v2052 = vpop.xlane.xlu0 %2051
    %v2053 = vsel %vm152, %v2049, 0.0
    %2054 = vadd.xlane.f32.xlu0 %v2053
    %v2055 = vpop.xlane.xlu0 %2054
    %vm2056 = vcmp.gt.f32.partialorder %v1962, 0.5
    %vm2057 = vcmp.gt.f32.partialorder %v1964, 0.5
    %v2058 = vsel %vm2056, %v1962, 0.0
    %v2059 = vsel %vm2057, %v1964, 0.0
    %v2060 = vsel %vm152, %v2058, 0.0
    %2061 = vadd.xlane.f32.xlu0 %v2060
    %v2062 = vpop.xlane.xlu0 %2061
    %v2063 = vsel %vm152, %v2059, 0.0
    %2064 = vadd.xlane.f32.xlu0 %v2063
    %v2065 = vpop.xlane.xlu0 %2064
    %v2066 = vadd.f32 %v2052, %v2062
    %v2067 = vadd.f32 %v2055, %v2065
    %vm2068 = vcmp.gt.f32.partialorder %v2043, 0.5
    %vm2069 = vcmp.gt.f32.partialorder %v2045, 0.5
    %v2070 = vsel %vm2068, %v2043, 0.0
    %v2071 = vsel %vm2069, %v2045, 0.0
    %v2072 = vsel %vm152, %v2070, 0.0
    %2073 = vadd.xlane.f32.xlu0 %v2072
    %v2074 = vpop.xlane.xlu0 %2073
    %v2075 = vsel %vm152, %v2071, 0.0
    %2076 = vadd.xlane.f32.xlu0 %v2075
    %v2077 = vpop.xlane.xlu0 %2076
    %v2078 = vadd.f32 %v2066, %v2074
    %v2079 = vadd.f32 %v2067, %v2077
    %vm2080 = vcmp.lt.f32.partialorder %v1881, 0.5
    %vm2081 = vcmp.lt.f32.partialorder %v1883, 0.5
    %v2082 = vsel %vm2080, %v1881, 0.0
    %v2083 = vsel %vm2081, %v1883, 0.0
    %v2084 = vsel %vm152, %v2082, 0.0
    %2085 = vadd.xlane.f32.xlu0 %v2084
    %v2086 = vpop.xlane.xlu0 %2085
    %v2087 = vsel %vm152, %v2083, 0.0
    %2088 = vadd.xlane.f32.xlu0 %v2087
    %v2089 = vpop.xlane.xlu0 %2088
    %v2090 = vadd.f32 %v2078, %v2086
    %v2091 = vadd.f32 %v2079, %v2089
    %vm2092 = vcmp.lt.f32.partialorder %v1962, 0.5
    %vm2093 = vcmp.lt.f32.partialorder %v1964, 0.5
    %v2094 = vsel %vm2092, %v1962, 0.0
    %v2095 = vsel %vm2093, %v1964, 0.0
    %v2096 = vsel %vm152, %v2094, 0.0
    %2097 = vadd.xlane.f32.xlu0 %v2096
    %v2098 = vpop.xlane.xlu0 %2097
    %v2099 = vsel %vm152, %v2095, 0.0
    %2100 = vadd.xlane.f32.xlu0 %v2099
    %v2101 = vpop.xlane.xlu0 %2100
    %v2102 = vadd.f32 %v2090, %v2098
    %v2103 = vadd.f32 %v2091, %v2101
    %vm2104 = vcmp.lt.f32.partialorder %v2043, 0.5
    %vm2105 = vcmp.lt.f32.partialorder %v2045, 0.5
    %v2106 = vsel %vm2104, %v2043, 0.0
    %v2107 = vsel %vm2105, %v2045, 0.0
    %v2108 = vsel %vm152, %v2106, 0.0
    %2109 = vadd.xlane.f32.xlu0 %v2108
    %v2110 = vpop.xlane.xlu0 %2109
    %v2111 = vsel %vm152, %v2107, 0.0
    %2112 = vadd.xlane.f32.xlu0 %v2111
    %v2113 = vpop.xlane.xlu0 %2112
    %v2114 = vadd.f32 %v2102, %v2110
    %v2115 = vadd.f32 %v2103, %v2113
    %v2116 = vrcp.pop %v2114
    %v2117 = vmul.f32 %v2078, %v2116
    %v2118 = vrcp.pop %v2115
    %v2119 = vmul.f32 %v2079, %v2118
    %v2120 = vlog2.pop %v2117
    %v2121 = vmul.f32 %v2120, 0.6931472
    %v2122 = vlog2.pop %v2119
    %v2123 = vmul.f32 %v2122, 0.6931472
    %v2124 = vsub.f32 0.0, %v2121
    %v2125 = vsub.f32 0.0, %v2123
    %v2126 = vsel %vm1715, %v2124, 0.0
    %v2127 = vsel %vm1715, %v2125, 0.0
    %v2128 = vadd.f32 %v2126, %v2127
    %2129 = vadd.xlane.f32.xlu0 %v2128
    %v2130 = vpop.xlane.xlu0 %2129
    %v2131 = vrot.slane %v2130, 4
    %v2132 = vadd.f32 %v2130, %v2131
    %v2133 = vrot.slane %v2132, 2
    %v2134 = vadd.f32 %v2132, %v2133
    %v2135 = vrot.slane %v2134, 1
    %v2136 = vadd.f32 %v2134, %v2135
    %s2137 = vtos %v2136
    %v2138 = vrcp.pop 16.0
    %s2139 = vtos %v2138
    %s2140 = smul.f32 %s2137, %s2139
    %s2141 = sadd.f32 %s1730, %s2140
    %2142 = vst.msk [vmem:[#allocation6] sm:$0xff] %vm63, %v1195
    %2143 = vst.msk [vmem:[#allocation6 + $0x8] sm:$0xff] %vm63, %v1196
    %2144 = vst.msk [vmem:[#allocation7] sm:$0xff] %vm152, %v1317
    %2145 = vst.msk [vmem:[#allocation7 + $0x8] sm:$0xff] %vm152, %v1318
    %s2146 = scalar_lea.smem [#allocation9], 0
    %2147 = sst [smem:[%s2146]] %s2141
    // Predicated region
    $region46: #{tpu_custom_call.1} parent=1 // pred_check
      _
    $region47: #{tpu_custom_call.1} parent=1 // pred_check_branch
      %2149 = sbr.rel (0) target = $region49
    $region48: #{tpu_custom_call.1} parent=1 // pred_region
      %s2151 = ssub.s32 256, 256
      %2152 = vsyncadd [#allocation4], %s2151
      %s2153 = sshll.u32 [#allocation6], 4
      %s2154 = int_to_ptr.vmem [resolvable:$true] %s2153
      %2159 = dma.vmem_to_hbm [thread:$0]  %s2154, 256, %s10, [#allocation4], 128, 128, 8
    $region49: #{tpu_custom_call.1} parent=1 // pred_fallthru
      _
    // Predicated region
    $region50: #{tpu_custom_call.1} parent=1 // pred_check
      _
    $region51: #{tpu_custom_call.1} parent=1 // pred_check_branch
      %2161 = sbr.rel (0) target = $region53
    $region52: #{tpu_custom_call.1} parent=1 // pred_region
      %s2163 = ssub.s32 256, 256
      %2164 = vsyncadd [#allocation8], %s2163
      %s2165 = sshll.u32 [#allocation7], 4
      %s2166 = int_to_ptr.vmem [resolvable:$true] %s2165
      %2171 = dma.vmem_to_hbm [thread:$0]  %s2166, 256, %s11, [#allocation8], 128, 128, 8
    $region53: #{tpu_custom_call.1} parent=1 // pred_fallthru
      _
    // Predicated region
    $region54: #{tpu_custom_call.1} parent=1 // pred_check
      _
    $region55: #{tpu_custom_call.1} parent=1 // pred_check_branch
      %2173 = sbr.rel (0) target = $region57
    $region56: #{tpu_custom_call.1} parent=1 // pred_region
      %s2175 = ssub.s32 16, 16
      %2176 = vsyncadd [#allocation5], %s2175
      %2179 = dma.smem_to_hbm [#allocation9], 16, %s12, [#allocation5]
    $region57: #{tpu_custom_call.1} parent=1 // pred_fallthru
      _
    // Predicated region
    $region58: #{tpu_custom_call.1} parent=1 // pred_check
      _
    $region59: #{tpu_custom_call.1} parent=1 // pred_check_branch
      %2181 = sbr.rel (0) target = $region61
    $region60: #{tpu_custom_call.1} parent=1 // pred_region
      %2182 = dma.done [#allocation4], 256
    $region61: #{tpu_custom_call.1} parent=1 // pred_fallthru
      _
    // Predicated region
    $region62: #{tpu_custom_call.1} parent=1 // pred_check
      _
    $region63: #{tpu_custom_call.1} parent=1 // pred_check_branch
      %2184 = sbr.rel (0) target = $region65
    $region64: #{tpu_custom_call.1} parent=1 // pred_region
      %2185 = dma.done [#allocation8], 256
    $region65: #{tpu_custom_call.1} parent=1 // pred_fallthru
      _
    // Predicated region
    $region66: #{tpu_custom_call.1} parent=1 // pred_check
      _
    $region67: #{tpu_custom_call.1} parent=1 // pred_check_branch
      %2187 = sbr.rel (0) target = $region69
    $region68: #{tpu_custom_call.1} parent=1 // pred_region
      %2188 = dma.done [#allocation5], 16
    $region69: #{tpu_custom_call.1} parent=1 // pred_fallthru
      _
    %2189 = sfence
    %2190 = vsyncpa [#allocation3], 1
    %2191 = vsyncpa [#allocation4], 1
    %2192 = vsyncpa [#allocation8], 1
    %2193 = vsyncpa [#allocation5], 1

</llo_original>
